<compile_context>
chip_gen: v7x
topology: tpu7x:2x2x1
jax: 0.10.0
libtpu: 0.0.40
codegen_flags: <defaults>
</compile_context>

<pallas_src>
import functools

import jax
import jax.numpy as jnp
from jax import lax
from jax.experimental import pallas as pl
from jax.experimental.pallas import tpu as pltpu


D_PAD = 128        # lane-padded hidden width (all layer dims <= 128)
BATCH_TILE = 128   # rows per grid step (one register-resident chunk)


def mlp_kernel(x_ref, w_ref, b_ref, o_ref):
    """Whole-MLP forward for one (batch_tile, in_dim) batch tile.

    x_ref: (tile, in_dim)           un-padded input block
    w_ref: (depth, D_PAD, D_PAD)    packed, zero-padded weight slab, (in, out)
    b_ref: (depth, 1, D_PAD)        packed, zero-padded bias slab (always f32)
    o_ref: (1, out_dim, tile)       compacted, lane-dense output block
    """
    depth = w_ref.shape[0]
    in_dim = x_ref.shape[1]
    out_dim = o_ref.shape[1]
    compute_dtype = w_ref.dtype       # bf16 on the MXU fast path, else f32

    h = x_ref[...].astype(compute_dtype)                       # (tile, in_dim)

    # Layer 0 contracts over the true input width only (no lane-padded DMA).
    w0 = w_ref[0][:in_dim, :]                                   # (in_dim, D_PAD)
    h = jnp.dot(h, w0, preferred_element_type=jnp.float32) + b_ref[0]
    h = jnp.maximum(h, 0.0)

    for i in range(1, depth):                                   # static unroll
        h = jnp.dot(h.astype(compute_dtype), w_ref[i],
                    preferred_element_type=jnp.float32) + b_ref[i]
        if i < depth - 1:                                       # ReLU on all but last
            h = jnp.maximum(h, 0.0)

    # Only the first `out_dim` columns are real: transpose (XLU) and store a
    # lane-dense (out_dim, tile) row instead of a (tile, 128) padded block.
    h_t = h.T                                                   # (D_PAD, tile)
    o_ref[0] = h_t[:out_dim, :].astype(o_ref.dtype)


def pack_params(params, *, dtype=jnp.float32):
    """Pack the 2*depth tiny parameter tensors into two zero-padded slabs.

    Runs ONCE at init (hoisted out of the forward path).  `params` is a list
    of (W_t, b) with W_t shape (in, out), b shape (1, out).  Zero padding
    keeps the padded-lane math exact (padded lanes contribute exact zeros).
    """
    depth = len(params)
    w_slab = jnp.zeros((depth, D_PAD, D_PAD), jnp.float32)
    b_slab = jnp.zeros((depth, 1, D_PAD), jnp.float32)
    for i, (w, b) in enumerate(params):
        fi, fo = w.shape
        w_slab = w_slab.at[i, :fi, :fo].set(w)
        b_slab = b_slab.at[i, 0, :fo].set(b.reshape(-1))
    # Weights may go bf16 (v6e/v7x fast path); bias stays f32 (f32 accumulate).
    return w_slab.astype(dtype), b_slab


@functools.partial(jax.jit, static_argnames=("out_dim", "batch_tile"))
def mlp_forward(x, w_slab, b_slab, *, out_dim=1, batch_tile=BATCH_TILE):
    B, in_dim = x.shape
    depth = w_slab.shape[0]

    grid_b = pl.cdiv(B, batch_tile)
    b_pad = grid_b * batch_tile

    x = x.astype(w_slab.dtype)          # bf16 path halves the input DMA bytes
    if b_pad != B:                      # pad only the batch tail (rows)
        x = jnp.pad(x, ((0, b_pad - B), (0, 0)))

    out = pl.pallas_call(
        mlp_kernel,
        out_shape=jax.ShapeDtypeStruct((grid_b, out_dim, batch_tile), jnp.float32),
        grid=(grid_b,),
        in_specs=[
            # un-padded x: last dim == full array dim (10) is a legal block
            pl.BlockSpec((batch_tile, in_dim), lambda i: (i, 0)),
            # constant index maps -> slabs DMA'd once, VMEM-resident
            pl.BlockSpec((depth, D_PAD, D_PAD), lambda i: (0, 0, 0)),
            pl.BlockSpec((depth, 1, D_PAD), lambda i: (0, 0, 0)),
        ],
        out_specs=pl.BlockSpec((1, out_dim, batch_tile), lambda i: (i, 0, 0)),
        compiler_params=pltpu.CompilerParams(
            dimension_semantics=("parallel",)),
    )(x, w_slab, b_slab)

    # (grid_b, out_dim, tile) -> (b_pad, out_dim) -> (B, out_dim); tiny reshape.
    return out.transpose(0, 2, 1).reshape(b_pad, out_dim)[:B]


def init_fully_connected_old(key, *, width=32, depth=6, input_size=10,
                             output_size=1, bottleneck=None, layer_bottleneck=5):
    """Deterministic orthogonal init (weights) + zeros (biases), mirroring
    fully_connected_old.__init__ layer shapes."""
    assert layer_bottleneck < depth
    bottleneck = width if bottleneck is None else bottleneck
    assert bottleneck <= width

    widths = [width] * (depth - 1)
    widths[layer_bottleneck - 1] = bottleneck
    dims = [input_size] + widths + [output_size]   # depth Linear layers

    ortho = jax.nn.initializers.orthogonal()
    params = []
    for li in range(depth):
        key, sub = jax.random.split(key)
        fan_in, fan_out = dims[li], dims[li + 1]
        # PyTorch weight shape is (out, in); init orthogonally then transpose.
        w_pt = ortho(sub, (fan_out, fan_in), jnp.float32)
        w_t = jnp.transpose(w_pt)                  # (in, out) for the kernel
        b = jnp.zeros((1, fan_out), jnp.float32)
        params.append((w_t, b))
    return params


def mlp_reference(x, params):
    h = x
    for i, (w, b) in enumerate(params):
        h = jnp.dot(h, w, precision=lax.Precision.HIGHEST) + b
        if i < len(params) - 1:
            h = jnp.maximum(h, 0.0)
    return h


if __name__ == "__main__":
    key = jax.random.PRNGKey(0)
    k_x, k_p = jax.random.split(key)

    batch, input_size, width, output_size, depth = 600, 10, 32, 1, 6
    x = jax.random.normal(k_x, (batch, input_size), jnp.float32)
    params = init_fully_connected_old(
        k_p, width=width, depth=depth, input_size=input_size,
        output_size=output_size, bottleneck=None, layer_bottleneck=5)

    ref = mlp_reference(x, params)

    # f32 path (default): slabs packed once at init, forward is jit-cached.
    w_slab, b_slab = pack_params(params)
    out = jax.block_until_ready(
        mlp_forward(x, w_slab, b_slab, out_dim=output_size))
    assert out.shape == (batch, output_size)
    assert jnp.allclose(out, ref, atol=1e-5, rtol=1e-4)

    # bf16 MXU-operand fast path (v6e/v7x); f32 accumulation, loose tolerance.
    w_bf16, b_bf16 = pack_params(params, dtype=jnp.bfloat16)
    out_bf16 = jax.block_until_ready(
        mlp_forward(x, w_bf16, b_bf16, out_dim=output_size))
    assert out_bf16.shape == (batch, output_size)
    assert float(jnp.max(jnp.abs(out_bf16 - ref))) < 0.2

    print("KERNEL_OK")
</pallas_src>

<mosaic_0001>
module attributes {stable_mosaic.version = 11 : i64} {
  func.func @mlp_kernel(%arg0: i32, %arg1: memref<128x10xf32, #tpu.memory_space<vmem>>, %arg2: memref<6x128x128xf32, #tpu.memory_space<vmem>>, %arg3: memref<6x1x128xf32, #tpu.memory_space<vmem>>, %arg4: memref<1x1x128xf32, #tpu.memory_space<vmem>>) attributes {dimension_semantics = [#tpu.dimension_semantics<parallel>], iteration_bounds = array<i64: 5>, scalar_prefetch = 0 : i64, scratch_operands = 0 : i64, tpu.core_type = #tpu.core_type<tc>, window_params = [{transform_indices = @transform_0, window_bounds = array<i64: 128, 10>}, {pipeline_mode = #tpu.pipeline_mode<synchronous>, transform_indices = @transform_1, window_bounds = array<i64: 6, 128, 128>}, {pipeline_mode = #tpu.pipeline_mode<synchronous>, transform_indices = @transform_2, window_bounds = array<i64: 6, 1, 128>}, {transform_indices = @transform_3, window_bounds = array<i64: 1, 1, 128>}]} {
    %c0 = arith.constant 0 : index
    %c0_0 = arith.constant 0 : index
    %0 = vector.load %arg1[%c0, %c0_0] : memref<128x10xf32, #tpu.memory_space<vmem>>, vector<128x10xf32>
    %c0_1 = arith.constant 0 : index
    %c0_2 = arith.constant 0 : index
    %c0_3 = arith.constant 0 : index
    %1 = vector.load %arg2[%c0_1, %c0_2, %c0_3] : memref<6x128x128xf32, #tpu.memory_space<vmem>>, vector<1x128x128xf32>
    %2 = vector.shape_cast %1 : vector<1x128x128xf32> to vector<128x128xf32>
    %3 = vector.extract_strided_slice %2 {offsets = [0, 0], sizes = [10, 128], strides = [1, 1]} : vector<128x128xf32> to vector<10x128xf32>
    %cst = arith.constant dense<0.000000e+00> : vector<128x128xf32>
    %4 = tpu.matmul %0, %3, %cst {dimension_numbers = #tpu.dot_dimension_numbers<[1], [0], [0], [1], [0, 0, 1, 1], [], []>} : vector<128x10xf32>, vector<10x128xf32>, vector<128x128xf32> -> vector<128x128xf32>
    %c0_4 = arith.constant 0 : index
    %c0_5 = arith.constant 0 : index
    %c0_6 = arith.constant 0 : index
    %5 = vector.load %arg3[%c0_4, %c0_5, %c0_6] : memref<6x1x128xf32, #tpu.memory_space<vmem>>, vector<1x1x128xf32>
    %6 = vector.shape_cast %5 : vector<1x1x128xf32> to vector<1x128xf32>
    %7 = vector.broadcast %6 : vector<1x128xf32> to vector<128x128xf32>
    %8 = arith.addf %4, %7 : vector<128x128xf32>
    %cst_7 = arith.constant 0.000000e+00 : f32
    %9 = vector.broadcast %cst_7 : f32 to vector<128x128xf32>
    %10 = arith.maximumf %8, %9 : vector<128x128xf32>
    %c1 = arith.constant 1 : index
    %c0_8 = arith.constant 0 : index
    %c0_9 = arith.constant 0 : index
    %11 = vector.load %arg2[%c1, %c0_8, %c0_9] : memref<6x128x128xf32, #tpu.memory_space<vmem>>, vector<1x128x128xf32>
    %12 = vector.shape_cast %11 : vector<1x128x128xf32> to vector<128x128xf32>
    %cst_10 = arith.constant dense<0.000000e+00> : vector<128x128xf32>
    %13 = tpu.matmul %10, %12, %cst_10 {dimension_numbers = #tpu.dot_dimension_numbers<[1], [0], [0], [1], [0, 0, 1, 1], [], []>} : vector<128x128xf32>, vector<128x128xf32>, vector<128x128xf32> -> vector<128x128xf32>
    %c1_11 = arith.constant 1 : index
    %c0_12 = arith.constant 0 : index
    %c0_13 = arith.constant 0 : index
    %14 = vector.load %arg3[%c1_11, %c0_12, %c0_13] : memref<6x1x128xf32, #tpu.memory_space<vmem>>, vector<1x1x128xf32>
    %15 = vector.shape_cast %14 : vector<1x1x128xf32> to vector<1x128xf32>
    %16 = vector.broadcast %15 : vector<1x128xf32> to vector<128x128xf32>
    %17 = arith.addf %13, %16 : vector<128x128xf32>
    %cst_14 = arith.constant 0.000000e+00 : f32
    %18 = vector.broadcast %cst_14 : f32 to vector<128x128xf32>
    %19 = arith.maximumf %17, %18 : vector<128x128xf32>
    %c2 = arith.constant 2 : index
    %c0_15 = arith.constant 0 : index
    %c0_16 = arith.constant 0 : index
    %20 = vector.load %arg2[%c2, %c0_15, %c0_16] : memref<6x128x128xf32, #tpu.memory_space<vmem>>, vector<1x128x128xf32>
    %21 = vector.shape_cast %20 : vector<1x128x128xf32> to vector<128x128xf32>
    %cst_17 = arith.constant dense<0.000000e+00> : vector<128x128xf32>
    %22 = tpu.matmul %19, %21, %cst_17 {dimension_numbers = #tpu.dot_dimension_numbers<[1], [0], [0], [1], [0, 0, 1, 1], [], []>} : vector<128x128xf32>, vector<128x128xf32>, vector<128x128xf32> -> vector<128x128xf32>
    %c2_18 = arith.constant 2 : index
    %c0_19 = arith.constant 0 : index
    %c0_20 = arith.constant 0 : index
    %23 = vector.load %arg3[%c2_18, %c0_19, %c0_20] : memref<6x1x128xf32, #tpu.memory_space<vmem>>, vector<1x1x128xf32>
    %24 = vector.shape_cast %23 : vector<1x1x128xf32> to vector<1x128xf32>
    %25 = vector.broadcast %24 : vector<1x128xf32> to vector<128x128xf32>
    %26 = arith.addf %22, %25 : vector<128x128xf32>
    %cst_21 = arith.constant 0.000000e+00 : f32
    %27 = vector.broadcast %cst_21 : f32 to vector<128x128xf32>
    %28 = arith.maximumf %26, %27 : vector<128x128xf32>
    %c3 = arith.constant 3 : index
    %c0_22 = arith.constant 0 : index
    %c0_23 = arith.constant 0 : index
    %29 = vector.load %arg2[%c3, %c0_22, %c0_23] : memref<6x128x128xf32, #tpu.memory_space<vmem>>, vector<1x128x128xf32>
    %30 = vector.shape_cast %29 : vector<1x128x128xf32> to vector<128x128xf32>
    %cst_24 = arith.constant dense<0.000000e+00> : vector<128x128xf32>
    %31 = tpu.matmul %28, %30, %cst_24 {dimension_numbers = #tpu.dot_dimension_numbers<[1], [0], [0], [1], [0, 0, 1, 1], [], []>} : vector<128x128xf32>, vector<128x128xf32>, vector<128x128xf32> -> vector<128x128xf32>
    %c3_25 = arith.constant 3 : index
    %c0_26 = arith.constant 0 : index
    %c0_27 = arith.constant 0 : index
    %32 = vector.load %arg3[%c3_25, %c0_26, %c0_27] : memref<6x1x128xf32, #tpu.memory_space<vmem>>, vector<1x1x128xf32>
    %33 = vector.shape_cast %32 : vector<1x1x128xf32> to vector<1x128xf32>
    %34 = vector.broadcast %33 : vector<1x128xf32> to vector<128x128xf32>
    %35 = arith.addf %31, %34 : vector<128x128xf32>
    %cst_28 = arith.constant 0.000000e+00 : f32
    %36 = vector.broadcast %cst_28 : f32 to vector<128x128xf32>
    %37 = arith.maximumf %35, %36 : vector<128x128xf32>
    %c4 = arith.constant 4 : index
    %c0_29 = arith.constant 0 : index
    %c0_30 = arith.constant 0 : index
    %38 = vector.load %arg2[%c4, %c0_29, %c0_30] : memref<6x128x128xf32, #tpu.memory_space<vmem>>, vector<1x128x128xf32>
    %39 = vector.shape_cast %38 : vector<1x128x128xf32> to vector<128x128xf32>
    %cst_31 = arith.constant dense<0.000000e+00> : vector<128x128xf32>
    %40 = tpu.matmul %37, %39, %cst_31 {dimension_numbers = #tpu.dot_dimension_numbers<[1], [0], [0], [1], [0, 0, 1, 1], [], []>} : vector<128x128xf32>, vector<128x128xf32>, vector<128x128xf32> -> vector<128x128xf32>
    %c4_32 = arith.constant 4 : index
    %c0_33 = arith.constant 0 : index
    %c0_34 = arith.constant 0 : index
    %41 = vector.load %arg3[%c4_32, %c0_33, %c0_34] : memref<6x1x128xf32, #tpu.memory_space<vmem>>, vector<1x1x128xf32>
    %42 = vector.shape_cast %41 : vector<1x1x128xf32> to vector<1x128xf32>
    %43 = vector.broadcast %42 : vector<1x128xf32> to vector<128x128xf32>
    %44 = arith.addf %40, %43 : vector<128x128xf32>
    %cst_35 = arith.constant 0.000000e+00 : f32
    %45 = vector.broadcast %cst_35 : f32 to vector<128x128xf32>
    %46 = arith.maximumf %44, %45 : vector<128x128xf32>
    %c5 = arith.constant 5 : index
    %c0_36 = arith.constant 0 : index
    %c0_37 = arith.constant 0 : index
    %47 = vector.load %arg2[%c5, %c0_36, %c0_37] : memref<6x128x128xf32, #tpu.memory_space<vmem>>, vector<1x128x128xf32>
    %48 = vector.shape_cast %47 : vector<1x128x128xf32> to vector<128x128xf32>
    %cst_38 = arith.constant dense<0.000000e+00> : vector<128x128xf32>
    %49 = tpu.matmul %46, %48, %cst_38 {dimension_numbers = #tpu.dot_dimension_numbers<[1], [0], [0], [1], [0, 0, 1, 1], [], []>} : vector<128x128xf32>, vector<128x128xf32>, vector<128x128xf32> -> vector<128x128xf32>
    %c5_39 = arith.constant 5 : index
    %c0_40 = arith.constant 0 : index
    %c0_41 = arith.constant 0 : index
    %50 = vector.load %arg3[%c5_39, %c0_40, %c0_41] : memref<6x1x128xf32, #tpu.memory_space<vmem>>, vector<1x1x128xf32>
    %51 = vector.shape_cast %50 : vector<1x1x128xf32> to vector<1x128xf32>
    %52 = vector.broadcast %51 : vector<1x128xf32> to vector<128x128xf32>
    %53 = arith.addf %49, %52 : vector<128x128xf32>
    %54 = tpu.transpose %53, [1, 0] : vector<128x128xf32> -> vector<128x128xf32>
    %55 = vector.extract_strided_slice %54 {offsets = [0, 0], sizes = [1, 128], strides = [1, 1]} : vector<128x128xf32> to vector<1x128xf32>
    %c0_42 = arith.constant 0 : index
    %c0_43 = arith.constant 0 : index
    %c0_44 = arith.constant 0 : index
    %56 = vector.load %arg4[%c0_42, %c0_43, %c0_44] : memref<1x1x128xf32, #tpu.memory_space<vmem>>, vector<1x1x128xf32>
    %57 = vector.shape_cast %56 : vector<1x1x128xf32> to vector<1x128xf32>
    %58 = vector.shape_cast %55 : vector<1x128xf32> to vector<1x1x128xf32>
    tpu.vector_store %arg4[%c0_42, %c0_43, %c0_44], %58 {strides = array<i32>} : memref<1x1x128xf32, #tpu.memory_space<vmem>>, vector<1x1x128xf32>,
    return
  }
  func.func @transform_0(%arg0: i32) -> (i32, i32) {
    %c0_i32 = arith.constant 0 : i32
    %c0_i32_0 = arith.constant 0 : i32
    return %arg0, %c0_i32 : i32, i32
  }
  func.func @transform_1(%arg0: i32) -> (i32, i32, i32) {
    %c0_i32 = arith.constant 0 : i32
    %c0_i32_0 = arith.constant 0 : i32
    %c0_i32_1 = arith.constant 0 : i32
    %c0_i32_2 = arith.constant 0 : i32
    return %c0_i32, %c0_i32_0, %c0_i32_1 : i32, i32, i32
  }
  func.func @transform_2(%arg0: i32) -> (i32, i32, i32) {
    %c0_i32 = arith.constant 0 : i32
    %c0_i32_0 = arith.constant 0 : i32
    %c0_i32_1 = arith.constant 0 : i32
    %c0_i32_2 = arith.constant 0 : i32
    return %c0_i32, %c0_i32_0, %c0_i32_1 : i32, i32, i32
  }
  func.func @transform_3(%arg0: i32) -> (i32, i32, i32) {
    %c0_i32 = arith.constant 0 : i32
    %c0_i32_0 = arith.constant 0 : i32
    %c0_i32_1 = arith.constant 0 : i32
    return %arg0, %c0_i32, %c0_i32_0 : i32, i32, i32
  }
}

</mosaic_0001>

<llo_original>
// kernel: mlp_forward.1
$region0: #{mlp_forward.1}
  #allocation0 [shape = 'u32[]', space=smem, size = 0x4, offset = 0x4, fixed_abs, tag = 'smem constant byte address 0x4 - core index']
  #allocation1 [shape = 'u32[144,128]{1,0:T(1,128)}', space=vmem, size = 0x12000, scoped, tag = 'internal scratch']
  %s0 = inlined_call_operand.vmem [shape: f32[640,10], index: 0, kind: input, shape index: {}]
  %s1 = inlined_call_operand.vmem [shape: f32[6,128,128], index: 1, kind: input, shape index: {}]
  %s2 = inlined_call_operand.vmem [shape: f32[6,1,128], index: 2, kind: input, shape index: {}]
  %s3 = inlined_call_operand.hbm [shape: f32[5,1,128], index: 3, kind: output, shape index: {}]
  %s4 = sld [smem:[#allocation0]]
  $region45: #{mlp_forward.1} parent=0
    _
  %s6 = ssub.s32 1, %s4
  %s7 = scalar_select 0, %s6, %s4
  $region1: #{mlp_forward.1} parent=0
    #allocation2 [shape = 'u8[1024]{0}', space=vmem, size = 0x400, scoped, tag = 'output window, operand 0']
    #allocation3 [shape = 's32[2]{0}', space=sflag, size = 0x8, scoped, tag = 'scoped memory for mlp_forward.1']
    %8 = vsyncpa [#allocation3], 0
    %s9 = scalar_lea.sflag [#allocation3], 1
    %10 = vsyncpa %s9, 0
    loop: start=0, step=1, limit=7
    $region2: #{mlp_forward.1} parent=1 // loop_pre_header
      _
    $region3: #{mlp_forward.1} parent=1 // loop_header
      %s12 = sphi 0, %s16
      %p13 = scmp.ge.s32.totalorder %s12, 7
      %s22 = sphi 0, %s24
      %s25 = sphi 0, %s22
      %s26 = sphi 0, %s25
      %s42 = sphi 0, %s26
      %s46 = sphi 0, %s46
      %s48 = sphi 0, %s46
      %s49 = sphi 0, %s48
      %s63 = sphi 0, %s49
      %s67 = sphi 0, %s67
      %s69 = sphi 0, %s67
      %s70 = sphi 0, %s69
      %s84 = sphi 0, %s70
      %s90 = sphi 0, %s92
      %s93 = sphi 0, %s90
      %s94 = sphi 0, %s93
      %s110 = sphi 0, %s94
    $region4: #{mlp_forward.1} parent=1 // loop_header_branch
      %15 = sbr.rel (%p13) target = $region8
    $region5: #{mlp_forward.1} parent=1 // loop_body
      %s17 = ssub.s32 %s12, 1
      %s18 = ssub.s32 %s12, 2
      %s19 = sadd.s32 %s12, 1
      %s20 = ssub.s32 %s12, %s19
      %p21 = scmp.eq.s32.totalorder %s20, 0
      %s23 = sadd.s32 %s22, 1
      %s24 = scalar_select %p21, %s22, %s23
      %p27 = pneg %p21
      %p28 = scmp.eq.s32.totalorder %s12, 4
      %p29 = por %p27, %p28
      %p30 = scmp.ne.s32.totalorder %s22, %s25
      %p31 = scmp.eq.s32.totalorder %s12, 0
      %p32 = por %p30, %p31
      %p33 = scmp.ne.s32.totalorder %s22, %s25
      %p34 = scmp.eq.s32.totalorder %s17, 4
      %p35 = por %p33, %p34
      %p36 = scmp.ne.s32.totalorder %s25, %s26
      %p37 = scmp.eq.s32.totalorder %s17, 0
      %p38 = por %p36, %p37
      %p39 = scmp.ne.s32.totalorder %s25, %s26
      %p40 = scmp.eq.s32.totalorder %s18, 4
      %p41 = por %p39, %p40
      %p43 = scmp.ne.s32.totalorder %s26, %s42
      %p44 = scmp.eq.s32.totalorder %s18, 0
      %p45 = por %p43, %p44
      %s47 = sadd.s32 %s46, 1
      %p50 = scmp.eq.s32.totalorder %s12, 4
      %p51 = scmp.ne.s32.totalorder %s46, %s48
      %p52 = scmp.eq.s32.totalorder %s12, 0
      %p53 = por %p51, %p52
      %p54 = scmp.ne.s32.totalorder %s46, %s48
      %p55 = scmp.eq.s32.totalorder %s17, 4
      %p56 = por %p54, %p55
      %p57 = scmp.ne.s32.totalorder %s48, %s49
      %p58 = scmp.eq.s32.totalorder %s17, 0
      %p59 = por %p57, %p58
      %p60 = scmp.ne.s32.totalorder %s48, %s49
      %p61 = scmp.eq.s32.totalorder %s18, 4
      %p62 = por %p60, %p61
      %p64 = scmp.ne.s32.totalorder %s49, %s63
      %p65 = scmp.eq.s32.totalorder %s18, 0
      %p66 = por %p64, %p65
      %s68 = sadd.s32 %s67, 1
      %p71 = scmp.eq.s32.totalorder %s12, 4
      %p72 = scmp.ne.s32.totalorder %s67, %s69
      %p73 = scmp.eq.s32.totalorder %s12, 0
      %p74 = por %p72, %p73
      %p75 = scmp.ne.s32.totalorder %s67, %s69
      %p76 = scmp.eq.s32.totalorder %s17, 4
      %p77 = por %p75, %p76
      %p78 = scmp.ne.s32.totalorder %s69, %s70
      %p79 = scmp.eq.s32.totalorder %s17, 0
      %p80 = por %p78, %p79
      %p81 = scmp.ne.s32.totalorder %s69, %s70
      %p82 = scmp.eq.s32.totalorder %s18, 4
      %p83 = por %p81, %p82
      %p85 = scmp.ne.s32.totalorder %s70, %s84
      %p86 = scmp.eq.s32.totalorder %s18, 0
      %p87 = por %p85, %p86
      %s88 = ssub.s32 %s12, %s19
      %p89 = scmp.eq.s32.totalorder %s88, 0
      %s91 = sadd.s32 %s90, 1
      %s92 = scalar_select %p89, %s90, %s91
      %p95 = pneg %p89
      %p96 = scmp.eq.s32.totalorder %s12, 4
      %p97 = por %p95, %p96
      %p98 = scmp.ne.s32.totalorder %s90, %s93
      %p99 = scmp.eq.s32.totalorder %s12, 0
      %p100 = por %p98, %p99
      %p101 = scmp.ne.s32.totalorder %s90, %s93
      %p102 = scmp.eq.s32.totalorder %s17, 4
      %p103 = por %p101, %p102
      %p104 = scmp.ne.s32.totalorder %s93, %s94
      %p105 = scmp.eq.s32.totalorder %s17, 0
      %p106 = por %p104, %p105
      %p107 = scmp.ne.s32.totalorder %s93, %s94
      %p108 = scmp.eq.s32.totalorder %s18, 4
      %p109 = por %p107, %p108
      %p111 = scmp.ne.s32.totalorder %s94, %s110
      %p112 = scmp.eq.s32.totalorder %s18, 0
      %p113 = por %p111, %p112
      %p114 = scmp.le.s32.totalorder 1, %s12
      %p115 = scmp.lt.s32.totalorder %s12, 6
      %p116 = pnand %p114, %p115
      %p117 = pneg %p116
      // Predicated region
      $region9: #{mlp_forward.1} parent=5 // pred_check
        _
      $region10: #{mlp_forward.1} parent=5 // pred_check_branch
        %119 = sbr.rel (%p116) target = $region12
      $region11: #{mlp_forward.1} parent=5 // pred_region
        %s120 = ssub.s32 %s12, 1
        // Predicated region
        $region13: #{mlp_forward.1} parent=11 // pred_check
          %p121 = pneg %p59
        $region14: #{mlp_forward.1} parent=11 // pred_check_branch
          %123 = sbr.rel (%p121) target = $region16
        $region15: #{mlp_forward.1} parent=11 // pred_region
          _
        $region16: #{mlp_forward.1} parent=11 // pred_fallthru
          _
        // Predicated region
        $region17: #{mlp_forward.1} parent=11 // pred_check
          %p124 = pneg %p80
        $region18: #{mlp_forward.1} parent=11 // pred_check_branch
          %126 = sbr.rel (%p124) target = $region20
        $region19: #{mlp_forward.1} parent=11 // pred_region
          _
        $region20: #{mlp_forward.1} parent=11 // pred_fallthru
          _
      $region12: #{mlp_forward.1} parent=5 // pred_fallthru
        _
      %p127 = scmp.lt.s32.totalorder %s12, 5
      // Predicated region
      $region21: #{mlp_forward.1} parent=5 // pred_check
        %p128 = pneg %p127
      $region22: #{mlp_forward.1} parent=5 // pred_check_branch
        %130 = sbr.rel (%p128) target = $region24
      $region23: #{mlp_forward.1} parent=5 // pred_region
        // Predicated region
        $region25: #{mlp_forward.1} parent=23 // pred_check
          %p131 = pneg %p32
        $region26: #{mlp_forward.1} parent=23 // pred_check_branch
          %133 = sbr.rel (%p131) target = $region28
        $region27: #{mlp_forward.1} parent=23 // pred_region
          %s134 = smul.u32 16, %s12
          %p135 = scmp.lt.s32.totalorder %s134, 79
          %s136 = scalar_select %p135, %s134, 79
          %s137 = smul.addr %s136, 8
          %s138 = scalar_lea.vmem %s0, %s137
          %s139 = smul.u32 16, %s12
        $region28: #{mlp_forward.1} parent=23 // pred_fallthru
          _
      $region24: #{mlp_forward.1} parent=5 // pred_fallthru
        _
      %p140 = scmp.le.s32.totalorder 1, %s12
      %p141 = scmp.lt.s32.totalorder %s12, 6
      %p142 = pnand %p140, %p141
      %p143 = pneg %p142
      // Predicated region
      $region29: #{mlp_forward.1} parent=5 // pred_check
        _
      $region30: #{mlp_forward.1} parent=5 // pred_check_branch
        %145 = sbr.rel (%p142) target = $region32
      $region31: #{mlp_forward.1} parent=5 // pred_region
        %s146 = ssub.s32 %s12, 1
        %s147 = smul.u32 16, %s17
        %p148 = scmp.lt.s32.totalorder %s147, 79
        %s149 = scalar_select %p148, %s147, 79
        %s150 = smul.addr %s149, 8
        %s151 = scalar_lea.vmem %s0, %s150
        %p152 = pneg %p38
        %p153 = pneg %p35
        %p154 = pneg %p59
        %p155 = pneg %p56
        %p156 = pneg %p80
        %p157 = pneg %p77
        %p158 = pneg %p106
        %p159 = pneg %p103
        %s160 = sand.u32 %s93, 1
        %s161 = scalar_lea.sflag [#allocation3], %s160
        %s162 = sand.u32 %s93, 1
        %s163 = scalar_lea.vmem [#allocation2], %s162
        %s164 = smul.u32 16, %s17
        %p165 = scmp.lt.s32.totalorder %s164, 79
        %s166 = scalar_select %p165, %s164, 79
        %s167 = smul.addr %s166, 8
        %s168 = scalar_lea.vmem %s0, %s167
        %s169 = smul.u32 16, %s17
        %v170 = vld [vmem:[%s168] sm:$0xff]
        %v171 = vld [vmem:[%s168 + $0x8] sm:$0xff]
        %v172 = vld [vmem:[%s168 + $0x10] sm:$0xff]
        %v173 = vld [vmem:[%s168 + $0x18] sm:$0xff]
        %v174 = vld [vmem:[%s168 + $0x20] sm:$0xff]
        %v175 = vld [vmem:[%s168 + $0x28] sm:$0xff]
        %v176 = vld [vmem:[%s168 + $0x30] sm:$0xff]
        %v177 = vld [vmem:[%s168 + $0x38] sm:$0xff]
        %v178 = vld [vmem:[%s168 + $0x40] sm:$0xff]
        %v179 = vld [vmem:[%s168 + $0x48] sm:$0xff]
        %v180 = vld [vmem:[%s168 + $0x50] sm:$0xff]
        %v181 = vld [vmem:[%s168 + $0x58] sm:$0xff]
        %v182 = vld [vmem:[%s168 + $0x60] sm:$0xff]
        %v183 = vld [vmem:[%s168 + $0x68] sm:$0xff]
        %v184 = vld [vmem:[%s168 + $0x70] sm:$0xff]
        %v185 = vld [vmem:[%s168 + $0x78] sm:$0xff]
        %v186 = vld [vmem:[%s1] sm:$0xff]
        %v187 = vld [vmem:[%s1 + $0x8] sm:$0xff]
        %v188 = vld [vmem:[%s2] sm:$0x1]
        %v190 = vlaneseq
        %v191 = vshrl.u32 %v190, 7
        %v192 = vsub.s32 0, %v191
        %v193 = vrot.slane %v188, %v192
        %vm195 = vcmask 80896
        %v197 = vsel %vm195, %v170, 0
        %v200 = vsel %vm195, %v171, 0
        %v203 = vsel %vm195, %v172, 0
        %v206 = vsel %vm195, %v173, 0
        %v209 = vsel %vm195, %v174, 0
        %v212 = vsel %vm195, %v175, 0
        %v215 = vsel %vm195, %v176, 0
        %v218 = vsel %vm195, %v177, 0
        %v221 = vsel %vm195, %v178, 0
        %v224 = vsel %vm195, %v179, 0
        %v227 = vsel %vm195, %v180, 0
        %v230 = vsel %vm195, %v181, 0
        %v233 = vsel %vm195, %v182, 0
        %v236 = vsel %vm195, %v183, 0
        %v239 = vsel %vm195, %v184, 0
        %v242 = vsel %vm195, %v185, 0
        %vm244 = vcmask 1041408
        %v246 = vsel %vm244, %v187, 0
        %248 = vmatprep.subr.mxu0 0.0
        %249 = vmatpush1.msra.mxu0 %v186
        %250 = vmatprep.subr.mxu0 0.0
        %251 = vmatpush1.msra.mxu0 %v246
        %252 = vmatprep.subr.mxu0 0.0
        %253 = vmatpush1.msra.mxu0 0.0
        %254 = vmatprep.subr.mxu0 0.0
        %255 = vmatpush1.msra.mxu0 0.0
        %256 = vmatprep.subr.mxu0 0.0
        %257 = vmatpush1.msra.mxu0 0.0
        %258 = vmatprep.subr.mxu0 0.0
        %259 = vmatpush1.msra.mxu0 0.0
        %260 = vmatprep.subr.mxu0 0.0
        %261 = vmatpush1.msra.mxu0 0.0
        %262 = vmatprep.subr.mxu0 0.0
        %263 = vmatpush1.msra.mxu0 0.0
        %264 = vmatprep.subr.mxu0 0.0
        %265 = vmatpush1.msra.mxu0 0.0
        %266 = vmatprep.subr.mxu0 0.0
        %267 = vmatpush1.msra.mxu0 0.0
        %268 = vmatprep.subr.mxu0 0.0
        %269 = vmatpush1.msra.mxu0 0.0
        %270 = vmatprep.subr.mxu0 0.0
        %271 = vmatpush1.msra.mxu0 0.0
        %272 = vmatprep.subr.mxu0 0.0
        %273 = vmatpush1.msra.mxu0 0.0
        %274 = vmatprep.subr.mxu0 0.0
        %275 = vmatpush1.msra.mxu0 0.0
        %276 = vmatprep.subr.mxu0 0.0
        %277 = vmatpush1.msra.mxu0 0.0
        %278 = vmatprep.subr.mxu0 0.0
        %279 = vmatpush1.msra.mxu0 0.0
        %280 = vmatprep.subr.mxu0 0.0
        %281 = vmatpush1.msra.mxu0 0.0
        %282 = vmatprep.subr.mxu0 0.0
        %283 = vmatpush1.msra.mxu0 0.0
        %284 = vmatprep.subr.mxu0 0.0
        %285 = vmatpush1.msra.mxu0 0.0
        %286 = vmatprep.subr.mxu0 0.0
        %287 = vmatpush1.msra.mxu0 0.0
        %288 = vmatprep.subr.mxu0 0.0
        %289 = vmatpush1.msra.mxu0 0.0
        %290 = vmatprep.subr.mxu0 0.0
        %291 = vmatpush1.msra.mxu0 0.0
        %292 = vmatprep.subr.mxu0 0.0
        %293 = vmatpush1.msra.mxu0 0.0
        %294 = vmatprep.subr.mxu0 0.0
        %295 = vmatpush1.msra.mxu0 0.0
        %296 = vmatprep.subr.mxu0 0.0
        %297 = vmatpush1.msra.mxu0 0.0
        %298 = vmatprep.subr.mxu0 0.0
        %299 = vmatpush1.msra.mxu0 0.0
        %300 = vmatprep.subr.mxu0 0.0
        %301 = vmatpush1.msra.mxu0 0.0
        %302 = vmatprep.subr.mxu0 0.0
        %303 = vmatpush1.msra.mxu0 0.0
        %304 = vmatprep.subr.mxu0 0.0
        %305 = vmatpush1.msra.mxu0 0.0
        %306 = vmatprep.subr.mxu0 0.0
        %307 = vmatpush1.msra.mxu0 0.0
        %308 = vmatprep.subr.mxu0 0.0
        %309 = vmatpush1.msra.mxu0 0.0
        %310 = vmatprep.subr.mxu0 0.0
        %311 = vmatpush1.msra.mxu0 0.0
        %312 = vmatprep.mubr.f32.mxu0 0.0
        %313 = vmatmul.mubr.f32.gmra.mrb[0].mxu0 %v197
        %v314 = vpop.f32.mrb[0].mxu0
        %v315 = vadd.f32 %v193, %v314
        %v316 = vpop.f32.mrb[0].mxu0
        %317 = vmatprep.mubr.f32.mxu0 0.0
        %318 = vmatmul.mubr.f32.gmra.mrb[0].mxu0 %v200
        %v319 = vpop.f32.mrb[0].mxu0
        %v320 = vadd.f32 %v193, %v319
        %v321 = vpop.f32.mrb[0].mxu0
        %322 = vmatprep.mubr.f32.mxu0 0.0
        %323 = vmatmul.mubr.f32.gmra.mrb[0].mxu0 %v203
        %v324 = vpop.f32.mrb[0].mxu0
        %v325 = vadd.f32 %v193, %v324
        %v326 = vpop.f32.mrb[0].mxu0
        %327 = vmatprep.mubr.f32.mxu0 0.0
        %328 = vmatmul.mubr.f32.gmra.mrb[0].mxu0 %v206
        %v329 = vpop.f32.mrb[0].mxu0
        %v330 = vadd.f32 %v193, %v329
        %v331 = vpop.f32.mrb[0].mxu0
        %332 = vmatprep.mubr.f32.mxu0 0.0
        %333 = vmatmul.mubr.f32.gmra.mrb[0].mxu0 %v209
        %v334 = vpop.f32.mrb[0].mxu0
        %v335 = vadd.f32 %v193, %v334
        %v336 = vpop.f32.mrb[0].mxu0
        %337 = vmatprep.mubr.f32.mxu0 0.0
        %338 = vmatmul.mubr.f32.gmra.mrb[0].mxu0 %v212
        %v339 = vpop.f32.mrb[0].mxu0
        %v340 = vadd.f32 %v193, %v339
        %v341 = vpop.f32.mrb[0].mxu0
        %342 = vmatprep.mubr.f32.mxu0 0.0
        %343 = vmatmul.mubr.f32.gmra.mrb[0].mxu0 %v215
        %v344 = vpop.f32.mrb[0].mxu0
        %v345 = vadd.f32 %v193, %v344
        %v346 = vpop.f32.mrb[0].mxu0
        %347 = vmatprep.mubr.f32.mxu0 0.0
        %348 = vmatmul.mubr.f32.gmra.mrb[0].mxu0 %v218
        %v349 = vpop.f32.mrb[0].mxu0
        %v350 = vadd.f32 %v193, %v349
        %v351 = vpop.f32.mrb[0].mxu0
        %352 = vmatprep.mubr.f32.mxu0 0.0
        %353 = vmatmul.mubr.f32.gmra.mrb[0].mxu0 %v221
        %v354 = vpop.f32.mrb[0].mxu0
        %v355 = vadd.f32 %v193, %v354
        %v356 = vpop.f32.mrb[0].mxu0
        %357 = vmatprep.mubr.f32.mxu0 0.0
        %358 = vmatmul.mubr.f32.gmra.mrb[0].mxu0 %v224
        %v359 = vpop.f32.mrb[0].mxu0
        %v360 = vadd.f32 %v193, %v359
        %v361 = vpop.f32.mrb[0].mxu0
        %362 = vmatprep.mubr.f32.mxu0 0.0
        %363 = vmatmul.mubr.f32.gmra.mrb[0].mxu0 %v227
        %v364 = vpop.f32.mrb[0].mxu0
        %v365 = vadd.f32 %v193, %v364
        %v366 = vpop.f32.mrb[0].mxu0
        %367 = vmatprep.mubr.f32.mxu0 0.0
        %368 = vmatmul.mubr.f32.gmra.mrb[0].mxu0 %v230
        %v369 = vpop.f32.mrb[0].mxu0
        %v370 = vadd.f32 %v193, %v369
        %v371 = vpop.f32.mrb[0].mxu0
        %372 = vmatprep.mubr.f32.mxu0 0.0
        %373 = vmatmul.mubr.f32.gmra.mrb[0].mxu0 %v233
        %v374 = vpop.f32.mrb[0].mxu0
        %v375 = vadd.f32 %v193, %v374
        %v376 = vpop.f32.mrb[0].mxu0
        %377 = vmatprep.mubr.f32.mxu0 0.0
        %378 = vmatmul.mubr.f32.gmra.mrb[0].mxu0 %v236
        %v379 = vpop.f32.mrb[0].mxu0
        %v380 = vadd.f32 %v193, %v379
        %v381 = vpop.f32.mrb[0].mxu0
        %382 = vmatprep.mubr.f32.mxu0 0.0
        %383 = vmatmul.mubr.f32.gmra.mrb[0].mxu0 %v239
        %v384 = vpop.f32.mrb[0].mxu0
        %v385 = vadd.f32 %v193, %v384
        %v386 = vpop.f32.mrb[0].mxu0
        %387 = vmatprep.mubr.f32.mxu0 0.0
        %388 = vmatmul.mubr.f32.gmra.mrb[0].mxu0 %v242
        %v389 = vpop.f32.mrb[0].mxu0
        %v390 = vadd.f32 %v193, %v389
        %v391 = vpop.f32.mrb[0].mxu0
        %392 = vdwg.mxu0
        %v393 = vmax.f32 %v315, 0.0
        %v394 = vmax.f32 %v320, 0.0
        %v395 = vmax.f32 %v325, 0.0
        %v396 = vmax.f32 %v330, 0.0
        %v397 = vmax.f32 %v335, 0.0
        %v398 = vmax.f32 %v340, 0.0
        %v399 = vmax.f32 %v345, 0.0
        %v400 = vmax.f32 %v350, 0.0
        %v401 = vmax.f32 %v355, 0.0
        %v402 = vmax.f32 %v360, 0.0
        %v403 = vmax.f32 %v365, 0.0
        %v404 = vmax.f32 %v370, 0.0
        %v405 = vmax.f32 %v375, 0.0
        %v406 = vmax.f32 %v380, 0.0
        %v407 = vmax.f32 %v385, 0.0
        %v408 = vmax.f32 %v390, 0.0
        %s409 = scalar_lea.vmem %s1, 128
        %v410 = vld [vmem:[%s409] sm:$0xff]
        %v411 = vld [vmem:[%s409 + $0x8] sm:$0xff]
        %v412 = vld [vmem:[%s409 + $0x10] sm:$0xff]
        %v413 = vld [vmem:[%s409 + $0x18] sm:$0xff]
        %v414 = vld [vmem:[%s409 + $0x20] sm:$0xff]
        %v415 = vld [vmem:[%s409 + $0x28] sm:$0xff]
        %v416 = vld [vmem:[%s409 + $0x30] sm:$0xff]
        %v417 = vld [vmem:[%s409 + $0x38] sm:$0xff]
        %v418 = vld [vmem:[%s409 + $0x40] sm:$0xff]
        %v419 = vld [vmem:[%s409 + $0x48] sm:$0xff]
        %v420 = vld [vmem:[%s409 + $0x50] sm:$0xff]
        %v421 = vld [vmem:[%s409 + $0x58] sm:$0xff]
        %v422 = vld [vmem:[%s409 + $0x60] sm:$0xff]
        %v423 = vld [vmem:[%s409 + $0x68] sm:$0xff]
        %v424 = vld [vmem:[%s409 + $0x70] sm:$0xff]
        %v425 = vld [vmem:[%s409 + $0x78] sm:$0xff]
        %s426 = scalar_lea.vmem %s2, 1
        %v427 = vld [vmem:[%s426] sm:$0x1]
        %v429 = vlaneseq
        %v430 = vshrl.u32 %v429, 7
        %v431 = vsub.s32 0, %v430
        %v432 = vrot.slane %v427, %v431
        %434 = vmatprep.subr.mxu0 0.0
        %435 = vmatpush1.msra.mxu0 %v410
        %436 = vmatprep.subr.mxu0 0.0
        %437 = vmatpush1.msra.mxu0 %v411
        %438 = vmatprep.subr.mxu0 0.0
        %439 = vmatpush1.msra.mxu0 %v412
        %440 = vmatprep.subr.mxu0 0.0
        %441 = vmatpush1.msra.mxu0 %v413
        %442 = vmatprep.subr.mxu0 0.0
        %443 = vmatpush1.msra.mxu0 %v414
        %444 = vmatprep.subr.mxu0 0.0
        %445 = vmatpush1.msra.mxu0 %v415
        %446 = vmatprep.subr.mxu0 0.0
        %447 = vmatpush1.msra.mxu0 %v416
        %448 = vmatprep.subr.mxu0 0.0
        %449 = vmatpush1.msra.mxu0 %v417
        %450 = vmatprep.subr.mxu0 0.0
        %451 = vmatpush1.msra.mxu0 %v418
        %452 = vmatprep.subr.mxu0 0.0
        %453 = vmatpush1.msra.mxu0 %v419
        %454 = vmatprep.subr.mxu0 0.0
        %455 = vmatpush1.msra.mxu0 %v420
        %456 = vmatprep.subr.mxu0 0.0
        %457 = vmatpush1.msra.mxu0 %v421
        %458 = vmatprep.subr.mxu0 0.0
        %459 = vmatpush1.msra.mxu0 %v422
        %460 = vmatprep.subr.mxu0 0.0
        %461 = vmatpush1.msra.mxu0 %v423
        %462 = vmatprep.subr.mxu0 0.0
        %463 = vmatpush1.msra.mxu0 %v424
        %464 = vmatprep.subr.mxu0 0.0
        %465 = vmatpush1.msra.mxu0 %v425
        %466 = vmatprep.subr.mxu0 0.0
        %467 = vmatpush1.msra.mxu0 0.0
        %468 = vmatprep.subr.mxu0 0.0
        %469 = vmatpush1.msra.mxu0 0.0
        %470 = vmatprep.subr.mxu0 0.0
        %471 = vmatpush1.msra.mxu0 0.0
        %472 = vmatprep.subr.mxu0 0.0
        %473 = vmatpush1.msra.mxu0 0.0
        %474 = vmatprep.subr.mxu0 0.0
        %475 = vmatpush1.msra.mxu0 0.0
        %476 = vmatprep.subr.mxu0 0.0
        %477 = vmatpush1.msra.mxu0 0.0
        %478 = vmatprep.subr.mxu0 0.0
        %479 = vmatpush1.msra.mxu0 0.0
        %480 = vmatprep.subr.mxu0 0.0
        %481 = vmatpush1.msra.mxu0 0.0
        %482 = vmatprep.subr.mxu0 0.0
        %483 = vmatpush1.msra.mxu0 0.0
        %484 = vmatprep.subr.mxu0 0.0
        %485 = vmatpush1.msra.mxu0 0.0
        %486 = vmatprep.subr.mxu0 0.0
        %487 = vmatpush1.msra.mxu0 0.0
        %488 = vmatprep.subr.mxu0 0.0
        %489 = vmatpush1.msra.mxu0 0.0
        %490 = vmatprep.subr.mxu0 0.0
        %491 = vmatpush1.msra.mxu0 0.0
        %492 = vmatprep.subr.mxu0 0.0
        %493 = vmatpush1.msra.mxu0 0.0
        %494 = vmatprep.subr.mxu0 0.0
        %495 = vmatpush1.msra.mxu0 0.0
        %496 = vmatprep.subr.mxu0 0.0
        %497 = vmatpush1.msra.mxu0 0.0
        %498 = vmatprep.mubr.f32.mxu0 0.0
        %499 = vmatmul.mubr.f32.gmra.mrb[0].mxu0 %v393
        %v500 = vpop.f32.mrb[0].mxu0
        %v501 = vadd.f32 %v432, %v500
        %v502 = vpop.f32.mrb[0].mxu0
        %503 = vmatprep.mubr.f32.mxu0 0.0
        %504 = vmatmul.mubr.f32.gmra.mrb[0].mxu0 %v394
        %v505 = vpop.f32.mrb[0].mxu0
        %v506 = vadd.f32 %v432, %v505
        %v507 = vpop.f32.mrb[0].mxu0
        %508 = vmatprep.mubr.f32.mxu0 0.0
        %509 = vmatmul.mubr.f32.gmra.mrb[0].mxu0 %v395
        %v510 = vpop.f32.mrb[0].mxu0
        %v511 = vadd.f32 %v432, %v510
        %v512 = vpop.f32.mrb[0].mxu0
        %513 = vmatprep.mubr.f32.mxu0 0.0
        %514 = vmatmul.mubr.f32.gmra.mrb[0].mxu0 %v396
        %v515 = vpop.f32.mrb[0].mxu0
        %v516 = vadd.f32 %v432, %v515
        %v517 = vpop.f32.mrb[0].mxu0
        %518 = vmatprep.mubr.f32.mxu0 0.0
        %519 = vmatmul.mubr.f32.gmra.mrb[0].mxu0 %v397
        %v520 = vpop.f32.mrb[0].mxu0
        %v521 = vadd.f32 %v432, %v520
        %v522 = vpop.f32.mrb[0].mxu0
        %523 = vmatprep.mubr.f32.mxu0 0.0
        %524 = vmatmul.mubr.f32.gmra.mrb[0].mxu0 %v398
        %v525 = vpop.f32.mrb[0].mxu0
        %v526 = vadd.f32 %v432, %v525
        %v527 = vpop.f32.mrb[0].mxu0
        %528 = vmatprep.mubr.f32.mxu0 0.0
        %529 = vmatmul.mubr.f32.gmra.mrb[0].mxu0 %v399
        %v530 = vpop.f32.mrb[0].mxu0
        %v531 = vadd.f32 %v432, %v530
        %v532 = vpop.f32.mrb[0].mxu0
        %533 = vmatprep.mubr.f32.mxu0 0.0
        %534 = vmatmul.mubr.f32.gmra.mrb[0].mxu0 %v400
        %v535 = vpop.f32.mrb[0].mxu0
        %v536 = vadd.f32 %v432, %v535
        %v537 = vpop.f32.mrb[0].mxu0
        %538 = vmatprep.mubr.f32.mxu0 0.0
        %539 = vmatmul.mubr.f32.gmra.mrb[0].mxu0 %v401
        %v540 = vpop.f32.mrb[0].mxu0
        %v541 = vadd.f32 %v432, %v540
        %v542 = vpop.f32.mrb[0].mxu0
        %543 = vmatprep.mubr.f32.mxu0 0.0
        %544 = vmatmul.mubr.f32.gmra.mrb[0].mxu0 %v402
        %v545 = vpop.f32.mrb[0].mxu0
        %v546 = vadd.f32 %v432, %v545
        %v547 = vpop.f32.mrb[0].mxu0
        %548 = vmatprep.mubr.f32.mxu0 0.0
        %549 = vmatmul.mubr.f32.gmra.mrb[0].mxu0 %v403
        %v550 = vpop.f32.mrb[0].mxu0
        %v551 = vadd.f32 %v432, %v550
        %v552 = vpop.f32.mrb[0].mxu0
        %553 = vmatprep.mubr.f32.mxu0 0.0
        %554 = vmatmul.mubr.f32.gmra.mrb[0].mxu0 %v404
        %v555 = vpop.f32.mrb[0].mxu0
        %v556 = vadd.f32 %v432, %v555
        %v557 = vpop.f32.mrb[0].mxu0
        %558 = vmatprep.mubr.f32.mxu0 0.0
        %559 = vmatmul.mubr.f32.gmra.mrb[0].mxu0 %v405
        %v560 = vpop.f32.mrb[0].mxu0
        %v561 = vadd.f32 %v432, %v560
        %v562 = vpop.f32.mrb[0].mxu0
        %563 = vmatprep.mubr.f32.mxu0 0.0
        %564 = vmatmul.mubr.f32.gmra.mrb[0].mxu0 %v406
        %v565 = vpop.f32.mrb[0].mxu0
        %v566 = vadd.f32 %v432, %v565
        %v567 = vpop.f32.mrb[0].mxu0
        %568 = vmatprep.mubr.f32.mxu0 0.0
        %569 = vmatmul.mubr.f32.gmra.mrb[0].mxu0 %v407
        %v570 = vpop.f32.mrb[0].mxu0
        %v571 = vadd.f32 %v432, %v570
        %v572 = vpop.f32.mrb[0].mxu0
        %573 = vmatprep.mubr.f32.mxu0 0.0
        %574 = vmatmul.mubr.f32.gmra.mrb[0].mxu0 %v408
        %v575 = vpop.f32.mrb[0].mxu0
        %v576 = vadd.f32 %v432, %v575
        %v577 = vpop.f32.mrb[0].mxu0
        %578 = vdwg.mxu0
        %v579 = vmax.f32 %v501, 0.0
        %v580 = vmax.f32 %v506, 0.0
        %v581 = vmax.f32 %v511, 0.0
        %v582 = vmax.f32 %v516, 0.0
        %v583 = vmax.f32 %v521, 0.0
        %v584 = vmax.f32 %v526, 0.0
        %v585 = vmax.f32 %v531, 0.0
        %v586 = vmax.f32 %v536, 0.0
        %v587 = vmax.f32 %v541, 0.0
        %v588 = vmax.f32 %v546, 0.0
        %v589 = vmax.f32 %v551, 0.0
        %v590 = vmax.f32 %v556, 0.0
        %v591 = vmax.f32 %v561, 0.0
        %v592 = vmax.f32 %v566, 0.0
        %v593 = vmax.f32 %v571, 0.0
        %v594 = vmax.f32 %v576, 0.0
        %s595 = scalar_lea.vmem %s1, 256
        %v596 = vld [vmem:[%s595] sm:$0xff]
        %v597 = vld [vmem:[%s595 + $0x8] sm:$0xff]
        %v598 = vld [vmem:[%s595 + $0x10] sm:$0xff]
        %v599 = vld [vmem:[%s595 + $0x18] sm:$0xff]
        %v600 = vld [vmem:[%s595 + $0x20] sm:$0xff]
        %v601 = vld [vmem:[%s595 + $0x28] sm:$0xff]
        %v602 = vld [vmem:[%s595 + $0x30] sm:$0xff]
        %v603 = vld [vmem:[%s595 + $0x38] sm:$0xff]
        %v604 = vld [vmem:[%s595 + $0x40] sm:$0xff]
        %v605 = vld [vmem:[%s595 + $0x48] sm:$0xff]
        %v606 = vld [vmem:[%s595 + $0x50] sm:$0xff]
        %v607 = vld [vmem:[%s595 + $0x58] sm:$0xff]
        %v608 = vld [vmem:[%s595 + $0x60] sm:$0xff]
        %v609 = vld [vmem:[%s595 + $0x68] sm:$0xff]
        %v610 = vld [vmem:[%s595 + $0x70] sm:$0xff]
        %v611 = vld [vmem:[%s595 + $0x78] sm:$0xff]
        %s612 = scalar_lea.vmem %s2, 2
        %v613 = vld [vmem:[%s612] sm:$0x1]
        %v615 = vlaneseq
        %v616 = vshrl.u32 %v615, 7
        %v617 = vsub.s32 0, %v616
        %v618 = vrot.slane %v613, %v617
        %620 = vmatprep.subr.mxu0 0.0
        %621 = vmatpush1.msra.mxu0 %v596
        %622 = vmatprep.subr.mxu0 0.0
        %623 = vmatpush1.msra.mxu0 %v597
        %624 = vmatprep.subr.mxu0 0.0
        %625 = vmatpush1.msra.mxu0 %v598
        %626 = vmatprep.subr.mxu0 0.0
        %627 = vmatpush1.msra.mxu0 %v599
        %628 = vmatprep.subr.mxu0 0.0
        %629 = vmatpush1.msra.mxu0 %v600
        %630 = vmatprep.subr.mxu0 0.0
        %631 = vmatpush1.msra.mxu0 %v601
        %632 = vmatprep.subr.mxu0 0.0
        %633 = vmatpush1.msra.mxu0 %v602
        %634 = vmatprep.subr.mxu0 0.0
        %635 = vmatpush1.msra.mxu0 %v603
        %636 = vmatprep.subr.mxu0 0.0
        %637 = vmatpush1.msra.mxu0 %v604
        %638 = vmatprep.subr.mxu0 0.0
        %639 = vmatpush1.msra.mxu0 %v605
        %640 = vmatprep.subr.mxu0 0.0
        %641 = vmatpush1.msra.mxu0 %v606
        %642 = vmatprep.subr.mxu0 0.0
        %643 = vmatpush1.msra.mxu0 %v607
        %644 = vmatprep.subr.mxu0 0.0
        %645 = vmatpush1.msra.mxu0 %v608
        %646 = vmatprep.subr.mxu0 0.0
        %647 = vmatpush1.msra.mxu0 %v609
        %648 = vmatprep.subr.mxu0 0.0
        %649 = vmatpush1.msra.mxu0 %v610
        %650 = vmatprep.subr.mxu0 0.0
        %651 = vmatpush1.msra.mxu0 %v611
        %652 = vmatprep.subr.mxu0 0.0
        %653 = vmatpush1.msra.mxu0 0.0
        %654 = vmatprep.subr.mxu0 0.0
        %655 = vmatpush1.msra.mxu0 0.0
        %656 = vmatprep.subr.mxu0 0.0
        %657 = vmatpush1.msra.mxu0 0.0
        %658 = vmatprep.subr.mxu0 0.0
        %659 = vmatpush1.msra.mxu0 0.0
        %660 = vmatprep.subr.mxu0 0.0
        %661 = vmatpush1.msra.mxu0 0.0
        %662 = vmatprep.subr.mxu0 0.0
        %663 = vmatpush1.msra.mxu0 0.0
        %664 = vmatprep.subr.mxu0 0.0
        %665 = vmatpush1.msra.mxu0 0.0
        %666 = vmatprep.subr.mxu0 0.0
        %667 = vmatpush1.msra.mxu0 0.0
        %668 = vmatprep.subr.mxu0 0.0
        %669 = vmatpush1.msra.mxu0 0.0
        %670 = vmatprep.subr.mxu0 0.0
        %671 = vmatpush1.msra.mxu0 0.0
        %672 = vmatprep.subr.mxu0 0.0
        %673 = vmatpush1.msra.mxu0 0.0
        %674 = vmatprep.subr.mxu0 0.0
        %675 = vmatpush1.msra.mxu0 0.0
        %676 = vmatprep.subr.mxu0 0.0
        %677 = vmatpush1.msra.mxu0 0.0
        %678 = vmatprep.subr.mxu0 0.0
        %679 = vmatpush1.msra.mxu0 0.0
        %680 = vmatprep.subr.mxu0 0.0
        %681 = vmatpush1.msra.mxu0 0.0
        %682 = vmatprep.subr.mxu0 0.0
        %683 = vmatpush1.msra.mxu0 0.0
        %684 = vmatprep.mubr.f32.mxu0 0.0
        %685 = vmatmul.mubr.f32.gmra.mrb[0].mxu0 %v579
        %v686 = vpop.f32.mrb[0].mxu0
        %v687 = vadd.f32 %v618, %v686
        %v688 = vpop.f32.mrb[0].mxu0
        %689 = vmatprep.mubr.f32.mxu0 0.0
        %690 = vmatmul.mubr.f32.gmra.mrb[0].mxu0 %v580
        %v691 = vpop.f32.mrb[0].mxu0
        %v692 = vadd.f32 %v618, %v691
        %v693 = vpop.f32.mrb[0].mxu0
        %694 = vmatprep.mubr.f32.mxu0 0.0
        %695 = vmatmul.mubr.f32.gmra.mrb[0].mxu0 %v581
        %v696 = vpop.f32.mrb[0].mxu0
        %v697 = vadd.f32 %v618, %v696
        %v698 = vpop.f32.mrb[0].mxu0
        %699 = vmatprep.mubr.f32.mxu0 0.0
        %700 = vmatmul.mubr.f32.gmra.mrb[0].mxu0 %v582
        %v701 = vpop.f32.mrb[0].mxu0
        %v702 = vadd.f32 %v618, %v701
        %v703 = vpop.f32.mrb[0].mxu0
        %704 = vmatprep.mubr.f32.mxu0 0.0
        %705 = vmatmul.mubr.f32.gmra.mrb[0].mxu0 %v583
        %v706 = vpop.f32.mrb[0].mxu0
        %v707 = vadd.f32 %v618, %v706
        %v708 = vpop.f32.mrb[0].mxu0
        %709 = vmatprep.mubr.f32.mxu0 0.0
        %710 = vmatmul.mubr.f32.gmra.mrb[0].mxu0 %v584
        %v711 = vpop.f32.mrb[0].mxu0
        %v712 = vadd.f32 %v618, %v711
        %v713 = vpop.f32.mrb[0].mxu0
        %714 = vmatprep.mubr.f32.mxu0 0.0
        %715 = vmatmul.mubr.f32.gmra.mrb[0].mxu0 %v585
        %v716 = vpop.f32.mrb[0].mxu0
        %v717 = vadd.f32 %v618, %v716
        %v718 = vpop.f32.mrb[0].mxu0
        %719 = vmatprep.mubr.f32.mxu0 0.0
        %720 = vmatmul.mubr.f32.gmra.mrb[0].mxu0 %v586
        %v721 = vpop.f32.mrb[0].mxu0
        %v722 = vadd.f32 %v618, %v721
        %v723 = vpop.f32.mrb[0].mxu0
        %724 = vmatprep.mubr.f32.mxu0 0.0
        %725 = vmatmul.mubr.f32.gmra.mrb[0].mxu0 %v587
        %v726 = vpop.f32.mrb[0].mxu0
        %v727 = vadd.f32 %v618, %v726
        %v728 = vpop.f32.mrb[0].mxu0
        %729 = vmatprep.mubr.f32.mxu0 0.0
        %730 = vmatmul.mubr.f32.gmra.mrb[0].mxu0 %v588
        %v731 = vpop.f32.mrb[0].mxu0
        %v732 = vadd.f32 %v618, %v731
        %v733 = vpop.f32.mrb[0].mxu0
        %734 = vmatprep.mubr.f32.mxu0 0.0
        %735 = vmatmul.mubr.f32.gmra.mrb[0].mxu0 %v589
        %v736 = vpop.f32.mrb[0].mxu0
        %v737 = vadd.f32 %v618, %v736
        %v738 = vpop.f32.mrb[0].mxu0
        %739 = vmatprep.mubr.f32.mxu0 0.0
        %740 = vmatmul.mubr.f32.gmra.mrb[0].mxu0 %v590
        %v741 = vpop.f32.mrb[0].mxu0
        %v742 = vadd.f32 %v618, %v741
        %v743 = vpop.f32.mrb[0].mxu0
        %744 = vmatprep.mubr.f32.mxu0 0.0
        %745 = vmatmul.mubr.f32.gmra.mrb[0].mxu0 %v591
        %v746 = vpop.f32.mrb[0].mxu0
        %v747 = vadd.f32 %v618, %v746
        %v748 = vpop.f32.mrb[0].mxu0
        %749 = vmatprep.mubr.f32.mxu0 0.0
        %750 = vmatmul.mubr.f32.gmra.mrb[0].mxu0 %v592
        %v751 = vpop.f32.mrb[0].mxu0
        %v752 = vadd.f32 %v618, %v751
        %v753 = vpop.f32.mrb[0].mxu0
        %754 = vmatprep.mubr.f32.mxu0 0.0
        %755 = vmatmul.mubr.f32.gmra.mrb[0].mxu0 %v593
        %v756 = vpop.f32.mrb[0].mxu0
        %v757 = vadd.f32 %v618, %v756
        %v758 = vpop.f32.mrb[0].mxu0
        %759 = vmatprep.mubr.f32.mxu0 0.0
        %760 = vmatmul.mubr.f32.gmra.mrb[0].mxu0 %v594
        %v761 = vpop.f32.mrb[0].mxu0
        %v762 = vadd.f32 %v618, %v761
        %v763 = vpop.f32.mrb[0].mxu0
        %764 = vdwg.mxu0
        %v765 = vmax.f32 %v687, 0.0
        %v766 = vmax.f32 %v692, 0.0
        %v767 = vmax.f32 %v697, 0.0
        %v768 = vmax.f32 %v702, 0.0
        %v769 = vmax.f32 %v707, 0.0
        %v770 = vmax.f32 %v712, 0.0
        %v771 = vmax.f32 %v717, 0.0
        %v772 = vmax.f32 %v722, 0.0
        %v773 = vmax.f32 %v727, 0.0
        %v774 = vmax.f32 %v732, 0.0
        %v775 = vmax.f32 %v737, 0.0
        %v776 = vmax.f32 %v742, 0.0
        %v777 = vmax.f32 %v747, 0.0
        %v778 = vmax.f32 %v752, 0.0
        %v779 = vmax.f32 %v757, 0.0
        %v780 = vmax.f32 %v762, 0.0
        %s781 = scalar_lea.vmem %s1, 384
        %v782 = vld [vmem:[%s781] sm:$0xff]
        %v783 = vld [vmem:[%s781 + $0x8] sm:$0xff]
        %v784 = vld [vmem:[%s781 + $0x10] sm:$0xff]
        %v785 = vld [vmem:[%s781 + $0x18] sm:$0xff]
        %v786 = vld [vmem:[%s781 + $0x20] sm:$0xff]
        %v787 = vld [vmem:[%s781 + $0x28] sm:$0xff]
        %v788 = vld [vmem:[%s781 + $0x30] sm:$0xff]
        %v789 = vld [vmem:[%s781 + $0x38] sm:$0xff]
        %v790 = vld [vmem:[%s781 + $0x40] sm:$0xff]
        %v791 = vld [vmem:[%s781 + $0x48] sm:$0xff]
        %v792 = vld [vmem:[%s781 + $0x50] sm:$0xff]
        %v793 = vld [vmem:[%s781 + $0x58] sm:$0xff]
        %v794 = vld [vmem:[%s781 + $0x60] sm:$0xff]
        %v795 = vld [vmem:[%s781 + $0x68] sm:$0xff]
        %v796 = vld [vmem:[%s781 + $0x70] sm:$0xff]
        %v797 = vld [vmem:[%s781 + $0x78] sm:$0xff]
        %s798 = scalar_lea.vmem %s2, 3
        %v799 = vld [vmem:[%s798] sm:$0x1]
        %v801 = vlaneseq
        %v802 = vshrl.u32 %v801, 7
        %v803 = vsub.s32 0, %v802
        %v804 = vrot.slane %v799, %v803
        %806 = vmatprep.subr.mxu0 0.0
        %807 = vmatpush1.msra.mxu0 %v782
        %808 = vmatprep.subr.mxu0 0.0
        %809 = vmatpush1.msra.mxu0 %v783
        %810 = vmatprep.subr.mxu0 0.0
        %811 = vmatpush1.msra.mxu0 %v784
        %812 = vmatprep.subr.mxu0 0.0
        %813 = vmatpush1.msra.mxu0 %v785
        %814 = vmatprep.subr.mxu0 0.0
        %815 = vmatpush1.msra.mxu0 %v786
        %816 = vmatprep.subr.mxu0 0.0
        %817 = vmatpush1.msra.mxu0 %v787
        %818 = vmatprep.subr.mxu0 0.0
        %819 = vmatpush1.msra.mxu0 %v788
        %820 = vmatprep.subr.mxu0 0.0
        %821 = vmatpush1.msra.mxu0 %v789
        %822 = vmatprep.subr.mxu0 0.0
        %823 = vmatpush1.msra.mxu0 %v790
        %824 = vmatprep.subr.mxu0 0.0
        %825 = vmatpush1.msra.mxu0 %v791
        %826 = vmatprep.subr.mxu0 0.0
        %827 = vmatpush1.msra.mxu0 %v792
        %828 = vmatprep.subr.mxu0 0.0
        %829 = vmatpush1.msra.mxu0 %v793
        %830 = vmatprep.subr.mxu0 0.0
        %831 = vmatpush1.msra.mxu0 %v794
        %832 = vmatprep.subr.mxu0 0.0
        %833 = vmatpush1.msra.mxu0 %v795
        %834 = vmatprep.subr.mxu0 0.0
        %835 = vmatpush1.msra.mxu0 %v796
        %836 = vmatprep.subr.mxu0 0.0
        %837 = vmatpush1.msra.mxu0 %v797
        %838 = vmatprep.subr.mxu0 0.0
        %839 = vmatpush1.msra.mxu0 0.0
        %840 = vmatprep.subr.mxu0 0.0
        %841 = vmatpush1.msra.mxu0 0.0
        %842 = vmatprep.subr.mxu0 0.0
        %843 = vmatpush1.msra.mxu0 0.0
        %844 = vmatprep.subr.mxu0 0.0
        %845 = vmatpush1.msra.mxu0 0.0
        %846 = vmatprep.subr.mxu0 0.0
        %847 = vmatpush1.msra.mxu0 0.0
        %848 = vmatprep.subr.mxu0 0.0
        %849 = vmatpush1.msra.mxu0 0.0
        %850 = vmatprep.subr.mxu0 0.0
        %851 = vmatpush1.msra.mxu0 0.0
        %852 = vmatprep.subr.mxu0 0.0
        %853 = vmatpush1.msra.mxu0 0.0
        %854 = vmatprep.subr.mxu0 0.0
        %855 = vmatpush1.msra.mxu0 0.0
        %856 = vmatprep.subr.mxu0 0.0
        %857 = vmatpush1.msra.mxu0 0.0
        %858 = vmatprep.subr.mxu0 0.0
        %859 = vmatpush1.msra.mxu0 0.0
        %860 = vmatprep.subr.mxu0 0.0
        %861 = vmatpush1.msra.mxu0 0.0
        %862 = vmatprep.subr.mxu0 0.0
        %863 = vmatpush1.msra.mxu0 0.0
        %864 = vmatprep.subr.mxu0 0.0
        %865 = vmatpush1.msra.mxu0 0.0
        %866 = vmatprep.subr.mxu0 0.0
        %867 = vmatpush1.msra.mxu0 0.0
        %868 = vmatprep.subr.mxu0 0.0
        %869 = vmatpush1.msra.mxu0 0.0
        %870 = vmatprep.mubr.f32.mxu0 0.0
        %871 = vmatmul.mubr.f32.gmra.mrb[0].mxu0 %v765
        %v872 = vpop.f32.mrb[0].mxu0
        %v873 = vadd.f32 %v804, %v872
        %v874 = vpop.f32.mrb[0].mxu0
        %875 = vmatprep.mubr.f32.mxu0 0.0
        %876 = vmatmul.mubr.f32.gmra.mrb[0].mxu0 %v766
        %v877 = vpop.f32.mrb[0].mxu0
        %v878 = vadd.f32 %v804, %v877
        %v879 = vpop.f32.mrb[0].mxu0
        %880 = vmatprep.mubr.f32.mxu0 0.0
        %881 = vmatmul.mubr.f32.gmra.mrb[0].mxu0 %v767
        %v882 = vpop.f32.mrb[0].mxu0
        %v883 = vadd.f32 %v804, %v882
        %v884 = vpop.f32.mrb[0].mxu0
        %885 = vmatprep.mubr.f32.mxu0 0.0
        %886 = vmatmul.mubr.f32.gmra.mrb[0].mxu0 %v768
        %v887 = vpop.f32.mrb[0].mxu0
        %v888 = vadd.f32 %v804, %v887
        %v889 = vpop.f32.mrb[0].mxu0
        %890 = vmatprep.mubr.f32.mxu0 0.0
        %891 = vmatmul.mubr.f32.gmra.mrb[0].mxu0 %v769
        %v892 = vpop.f32.mrb[0].mxu0
        %v893 = vadd.f32 %v804, %v892
        %v894 = vpop.f32.mrb[0].mxu0
        %895 = vmatprep.mubr.f32.mxu0 0.0
        %896 = vmatmul.mubr.f32.gmra.mrb[0].mxu0 %v770
        %v897 = vpop.f32.mrb[0].mxu0
        %v898 = vadd.f32 %v804, %v897
        %v899 = vpop.f32.mrb[0].mxu0
        %900 = vmatprep.mubr.f32.mxu0 0.0
        %901 = vmatmul.mubr.f32.gmra.mrb[0].mxu0 %v771
        %v902 = vpop.f32.mrb[0].mxu0
        %v903 = vadd.f32 %v804, %v902
        %v904 = vpop.f32.mrb[0].mxu0
        %905 = vmatprep.mubr.f32.mxu0 0.0
        %906 = vmatmul.mubr.f32.gmra.mrb[0].mxu0 %v772
        %v907 = vpop.f32.mrb[0].mxu0
        %v908 = vadd.f32 %v804, %v907
        %v909 = vpop.f32.mrb[0].mxu0
        %910 = vmatprep.mubr.f32.mxu0 0.0
        %911 = vmatmul.mubr.f32.gmra.mrb[0].mxu0 %v773
        %v912 = vpop.f32.mrb[0].mxu0
        %v913 = vadd.f32 %v804, %v912
        %v914 = vpop.f32.mrb[0].mxu0
        %915 = vmatprep.mubr.f32.mxu0 0.0
        %916 = vmatmul.mubr.f32.gmra.mrb[0].mxu0 %v774
        %v917 = vpop.f32.mrb[0].mxu0
        %v918 = vadd.f32 %v804, %v917
        %v919 = vpop.f32.mrb[0].mxu0
        %920 = vmatprep.mubr.f32.mxu0 0.0
        %921 = vmatmul.mubr.f32.gmra.mrb[0].mxu0 %v775
        %v922 = vpop.f32.mrb[0].mxu0
        %v923 = vadd.f32 %v804, %v922
        %v924 = vpop.f32.mrb[0].mxu0
        %925 = vmatprep.mubr.f32.mxu0 0.0
        %926 = vmatmul.mubr.f32.gmra.mrb[0].mxu0 %v776
        %v927 = vpop.f32.mrb[0].mxu0
        %v928 = vadd.f32 %v804, %v927
        %v929 = vpop.f32.mrb[0].mxu0
        %930 = vmatprep.mubr.f32.mxu0 0.0
        %931 = vmatmul.mubr.f32.gmra.mrb[0].mxu0 %v777
        %v932 = vpop.f32.mrb[0].mxu0
        %v933 = vadd.f32 %v804, %v932
        %v934 = vpop.f32.mrb[0].mxu0
        %935 = vmatprep.mubr.f32.mxu0 0.0
        %936 = vmatmul.mubr.f32.gmra.mrb[0].mxu0 %v778
        %v937 = vpop.f32.mrb[0].mxu0
        %v938 = vadd.f32 %v804, %v937
        %v939 = vpop.f32.mrb[0].mxu0
        %940 = vmatprep.mubr.f32.mxu0 0.0
        %941 = vmatmul.mubr.f32.gmra.mrb[0].mxu0 %v779
        %v942 = vpop.f32.mrb[0].mxu0
        %v943 = vadd.f32 %v804, %v942
        %v944 = vpop.f32.mrb[0].mxu0
        %945 = vmatprep.mubr.f32.mxu0 0.0
        %946 = vmatmul.mubr.f32.gmra.mrb[0].mxu0 %v780
        %v947 = vpop.f32.mrb[0].mxu0
        %v948 = vadd.f32 %v804, %v947
        %v949 = vpop.f32.mrb[0].mxu0
        %950 = vdwg.mxu0
        %v951 = vmax.f32 %v873, 0.0
        %v952 = vmax.f32 %v878, 0.0
        %v953 = vmax.f32 %v883, 0.0
        %v954 = vmax.f32 %v888, 0.0
        %v955 = vmax.f32 %v893, 0.0
        %v956 = vmax.f32 %v898, 0.0
        %v957 = vmax.f32 %v903, 0.0
        %v958 = vmax.f32 %v908, 0.0
        %v959 = vmax.f32 %v913, 0.0
        %v960 = vmax.f32 %v918, 0.0
        %v961 = vmax.f32 %v923, 0.0
        %v962 = vmax.f32 %v928, 0.0
        %v963 = vmax.f32 %v933, 0.0
        %v964 = vmax.f32 %v938, 0.0
        %v965 = vmax.f32 %v943, 0.0
        %v966 = vmax.f32 %v948, 0.0
        %s967 = scalar_lea.vmem %s1, 512
        %v968 = vld [vmem:[%s967] sm:$0xff]
        %v969 = vld [vmem:[%s967 + $0x8] sm:$0xff]
        %v970 = vld [vmem:[%s967 + $0x10] sm:$0xff]
        %v971 = vld [vmem:[%s967 + $0x18] sm:$0xff]
        %v972 = vld [vmem:[%s967 + $0x20] sm:$0xff]
        %v973 = vld [vmem:[%s967 + $0x28] sm:$0xff]
        %v974 = vld [vmem:[%s967 + $0x30] sm:$0xff]
        %v975 = vld [vmem:[%s967 + $0x38] sm:$0xff]
        %v976 = vld [vmem:[%s967 + $0x40] sm:$0xff]
        %v977 = vld [vmem:[%s967 + $0x48] sm:$0xff]
        %v978 = vld [vmem:[%s967 + $0x50] sm:$0xff]
        %v979 = vld [vmem:[%s967 + $0x58] sm:$0xff]
        %v980 = vld [vmem:[%s967 + $0x60] sm:$0xff]
        %v981 = vld [vmem:[%s967 + $0x68] sm:$0xff]
        %v982 = vld [vmem:[%s967 + $0x70] sm:$0xff]
        %v983 = vld [vmem:[%s967 + $0x78] sm:$0xff]
        %s984 = scalar_lea.vmem %s2, 4
        %v985 = vld [vmem:[%s984] sm:$0x1]
        %v987 = vlaneseq
        %v988 = vshrl.u32 %v987, 7
        %v989 = vsub.s32 0, %v988
        %v990 = vrot.slane %v985, %v989
        %992 = vmatprep.subr.mxu0 0.0
        %993 = vmatpush1.msra.mxu0 %v968
        %994 = vmatprep.subr.mxu0 0.0
        %995 = vmatpush1.msra.mxu0 %v969
        %996 = vmatprep.subr.mxu0 0.0
        %997 = vmatpush1.msra.mxu0 %v970
        %998 = vmatprep.subr.mxu0 0.0
        %999 = vmatpush1.msra.mxu0 %v971
        %1000 = vmatprep.subr.mxu0 0.0
        %1001 = vmatpush1.msra.mxu0 %v972
        %1002 = vmatprep.subr.mxu0 0.0
        %1003 = vmatpush1.msra.mxu0 %v973
        %1004 = vmatprep.subr.mxu0 0.0
        %1005 = vmatpush1.msra.mxu0 %v974
        %1006 = vmatprep.subr.mxu0 0.0
        %1007 = vmatpush1.msra.mxu0 %v975
        %1008 = vmatprep.subr.mxu0 0.0
        %1009 = vmatpush1.msra.mxu0 %v976
        %1010 = vmatprep.subr.mxu0 0.0
        %1011 = vmatpush1.msra.mxu0 %v977
        %1012 = vmatprep.subr.mxu0 0.0
        %1013 = vmatpush1.msra.mxu0 %v978
        %1014 = vmatprep.subr.mxu0 0.0
        %1015 = vmatpush1.msra.mxu0 %v979
        %1016 = vmatprep.subr.mxu0 0.0
        %1017 = vmatpush1.msra.mxu0 %v980
        %1018 = vmatprep.subr.mxu0 0.0
        %1019 = vmatpush1.msra.mxu0 %v981
        %1020 = vmatprep.subr.mxu0 0.0
        %1021 = vmatpush1.msra.mxu0 %v982
        %1022 = vmatprep.subr.mxu0 0.0
        %1023 = vmatpush1.msra.mxu0 %v983
        %1024 = vmatprep.subr.mxu0 0.0
        %1025 = vmatpush1.msra.mxu0 0.0
        %1026 = vmatprep.subr.mxu0 0.0
        %1027 = vmatpush1.msra.mxu0 0.0
        %1028 = vmatprep.subr.mxu0 0.0
        %1029 = vmatpush1.msra.mxu0 0.0
        %1030 = vmatprep.subr.mxu0 0.0
        %1031 = vmatpush1.msra.mxu0 0.0
        %1032 = vmatprep.subr.mxu0 0.0
        %1033 = vmatpush1.msra.mxu0 0.0
        %1034 = vmatprep.subr.mxu0 0.0
        %1035 = vmatpush1.msra.mxu0 0.0
        %1036 = vmatprep.subr.mxu0 0.0
        %1037 = vmatpush1.msra.mxu0 0.0
        %1038 = vmatprep.subr.mxu0 0.0
        %1039 = vmatpush1.msra.mxu0 0.0
        %1040 = vmatprep.subr.mxu0 0.0
        %1041 = vmatpush1.msra.mxu0 0.0
        %1042 = vmatprep.subr.mxu0 0.0
        %1043 = vmatpush1.msra.mxu0 0.0
        %1044 = vmatprep.subr.mxu0 0.0
        %1045 = vmatpush1.msra.mxu0 0.0
        %1046 = vmatprep.subr.mxu0 0.0
        %1047 = vmatpush1.msra.mxu0 0.0
        %1048 = vmatprep.subr.mxu0 0.0
        %1049 = vmatpush1.msra.mxu0 0.0
        %1050 = vmatprep.subr.mxu0 0.0
        %1051 = vmatpush1.msra.mxu0 0.0
        %1052 = vmatprep.subr.mxu0 0.0
        %1053 = vmatpush1.msra.mxu0 0.0
        %1054 = vmatprep.subr.mxu0 0.0
        %1055 = vmatpush1.msra.mxu0 0.0
        %1056 = vmatprep.mubr.f32.mxu0 0.0
        %1057 = vmatmul.mubr.f32.gmra.mrb[0].mxu0 %v951
        %v1058 = vpop.f32.mrb[0].mxu0
        %v1059 = vadd.f32 %v990, %v1058
        %v1060 = vpop.f32.mrb[0].mxu0
        %1061 = vmatprep.mubr.f32.mxu0 0.0
        %1062 = vmatmul.mubr.f32.gmra.mrb[0].mxu0 %v952
        %v1063 = vpop.f32.mrb[0].mxu0
        %v1064 = vadd.f32 %v990, %v1063
        %v1065 = vpop.f32.mrb[0].mxu0
        %1066 = vmatprep.mubr.f32.mxu0 0.0
        %1067 = vmatmul.mubr.f32.gmra.mrb[0].mxu0 %v953
        %v1068 = vpop.f32.mrb[0].mxu0
        %v1069 = vadd.f32 %v990, %v1068
        %v1070 = vpop.f32.mrb[0].mxu0
        %1071 = vmatprep.mubr.f32.mxu0 0.0
        %1072 = vmatmul.mubr.f32.gmra.mrb[0].mxu0 %v954
        %v1073 = vpop.f32.mrb[0].mxu0
        %v1074 = vadd.f32 %v990, %v1073
        %v1075 = vpop.f32.mrb[0].mxu0
        %1076 = vmatprep.mubr.f32.mxu0 0.0
        %1077 = vmatmul.mubr.f32.gmra.mrb[0].mxu0 %v955
        %v1078 = vpop.f32.mrb[0].mxu0
        %v1079 = vadd.f32 %v990, %v1078
        %v1080 = vpop.f32.mrb[0].mxu0
        %1081 = vmatprep.mubr.f32.mxu0 0.0
        %1082 = vmatmul.mubr.f32.gmra.mrb[0].mxu0 %v956
        %v1083 = vpop.f32.mrb[0].mxu0
        %v1084 = vadd.f32 %v990, %v1083
        %v1085 = vpop.f32.mrb[0].mxu0
        %1086 = vmatprep.mubr.f32.mxu0 0.0
        %1087 = vmatmul.mubr.f32.gmra.mrb[0].mxu0 %v957
        %v1088 = vpop.f32.mrb[0].mxu0
        %v1089 = vadd.f32 %v990, %v1088
        %v1090 = vpop.f32.mrb[0].mxu0
        %1091 = vmatprep.mubr.f32.mxu0 0.0
        %1092 = vmatmul.mubr.f32.gmra.mrb[0].mxu0 %v958
        %v1093 = vpop.f32.mrb[0].mxu0
        %v1094 = vadd.f32 %v990, %v1093
        %v1095 = vpop.f32.mrb[0].mxu0
        %1096 = vmatprep.mubr.f32.mxu0 0.0
        %1097 = vmatmul.mubr.f32.gmra.mrb[0].mxu0 %v959
        %v1098 = vpop.f32.mrb[0].mxu0
        %v1099 = vadd.f32 %v990, %v1098
        %v1100 = vpop.f32.mrb[0].mxu0
        %1101 = vmatprep.mubr.f32.mxu0 0.0
        %1102 = vmatmul.mubr.f32.gmra.mrb[0].mxu0 %v960
        %v1103 = vpop.f32.mrb[0].mxu0
        %v1104 = vadd.f32 %v990, %v1103
        %v1105 = vpop.f32.mrb[0].mxu0
        %1106 = vmatprep.mubr.f32.mxu0 0.0
        %1107 = vmatmul.mubr.f32.gmra.mrb[0].mxu0 %v961
        %v1108 = vpop.f32.mrb[0].mxu0
        %v1109 = vadd.f32 %v990, %v1108
        %v1110 = vpop.f32.mrb[0].mxu0
        %1111 = vmatprep.mubr.f32.mxu0 0.0
        %1112 = vmatmul.mubr.f32.gmra.mrb[0].mxu0 %v962
        %v1113 = vpop.f32.mrb[0].mxu0
        %v1114 = vadd.f32 %v990, %v1113
        %v1115 = vpop.f32.mrb[0].mxu0
        %1116 = vmatprep.mubr.f32.mxu0 0.0
        %1117 = vmatmul.mubr.f32.gmra.mrb[0].mxu0 %v963
        %v1118 = vpop.f32.mrb[0].mxu0
        %v1119 = vadd.f32 %v990, %v1118
        %v1120 = vpop.f32.mrb[0].mxu0
        %1121 = vmatprep.mubr.f32.mxu0 0.0
        %1122 = vmatmul.mubr.f32.gmra.mrb[0].mxu0 %v964
        %v1123 = vpop.f32.mrb[0].mxu0
        %v1124 = vadd.f32 %v990, %v1123
        %v1125 = vpop.f32.mrb[0].mxu0
        %1126 = vmatprep.mubr.f32.mxu0 0.0
        %1127 = vmatmul.mubr.f32.gmra.mrb[0].mxu0 %v965
        %v1128 = vpop.f32.mrb[0].mxu0
        %v1129 = vadd.f32 %v990, %v1128
        %v1130 = vpop.f32.mrb[0].mxu0
        %1131 = vmatprep.mubr.f32.mxu0 0.0
        %1132 = vmatmul.mubr.f32.gmra.mrb[0].mxu0 %v966
        %v1133 = vpop.f32.mrb[0].mxu0
        %v1134 = vadd.f32 %v990, %v1133
        %v1135 = vpop.f32.mrb[0].mxu0
        %1136 = vdwg.mxu0
        %v1137 = vmax.f32 %v1059, 0.0
        %v1138 = vmax.f32 %v1064, 0.0
        %v1139 = vmax.f32 %v1069, 0.0
        %v1140 = vmax.f32 %v1074, 0.0
        %v1141 = vmax.f32 %v1079, 0.0
        %v1142 = vmax.f32 %v1084, 0.0
        %v1143 = vmax.f32 %v1089, 0.0
        %v1144 = vmax.f32 %v1094, 0.0
        %v1145 = vmax.f32 %v1099, 0.0
        %v1146 = vmax.f32 %v1104, 0.0
        %v1147 = vmax.f32 %v1109, 0.0
        %v1148 = vmax.f32 %v1114, 0.0
        %v1149 = vmax.f32 %v1119, 0.0
        %v1150 = vmax.f32 %v1124, 0.0
        %v1151 = vmax.f32 %v1129, 0.0
        %v1152 = vmax.f32 %v1134, 0.0
        %s1153 = scalar_lea.vmem %s1, 640
        %v1154 = vld [vmem:[%s1153] sm:$0xff]
        %v1155 = vld [vmem:[%s1153 + $0x8] sm:$0xff]
        %v1156 = vld [vmem:[%s1153 + $0x10] sm:$0xff]
        %v1157 = vld [vmem:[%s1153 + $0x18] sm:$0xff]
        %v1158 = vld [vmem:[%s1153 + $0x20] sm:$0xff]
        %v1159 = vld [vmem:[%s1153 + $0x28] sm:$0xff]
        %v1160 = vld [vmem:[%s1153 + $0x30] sm:$0xff]
        %v1161 = vld [vmem:[%s1153 + $0x38] sm:$0xff]
        %v1162 = vld [vmem:[%s1153 + $0x40] sm:$0xff]
        %v1163 = vld [vmem:[%s1153 + $0x48] sm:$0xff]
        %v1164 = vld [vmem:[%s1153 + $0x50] sm:$0xff]
        %v1165 = vld [vmem:[%s1153 + $0x58] sm:$0xff]
        %v1166 = vld [vmem:[%s1153 + $0x60] sm:$0xff]
        %v1167 = vld [vmem:[%s1153 + $0x68] sm:$0xff]
        %v1168 = vld [vmem:[%s1153 + $0x70] sm:$0xff]
        %v1169 = vld [vmem:[%s1153 + $0x78] sm:$0xff]
        %s1170 = scalar_lea.vmem %s2, 5
        %v1171 = vld [vmem:[%s1170] sm:$0x1]
        %v1173 = vlaneseq
        %v1174 = vshrl.u32 %v1173, 7
        %v1175 = vsub.s32 0, %v1174
        %v1176 = vrot.slane %v1171, %v1175
        %1178 = vmatprep.subr.mxu0 0.0
        %1179 = vmatpush1.msra.mxu0 %v1154
        %1180 = vmatprep.subr.mxu0 0.0
        %1181 = vmatpush1.msra.mxu0 %v1155
        %1182 = vmatprep.subr.mxu0 0.0
        %1183 = vmatpush1.msra.mxu0 %v1156
        %1184 = vmatprep.subr.mxu0 0.0
        %1185 = vmatpush1.msra.mxu0 %v1157
        %1186 = vmatprep.subr.mxu0 0.0
        %1187 = vmatpush1.msra.mxu0 %v1158
        %1188 = vmatprep.subr.mxu0 0.0
        %1189 = vmatpush1.msra.mxu0 %v1159
        %1190 = vmatprep.subr.mxu0 0.0
        %1191 = vmatpush1.msra.mxu0 %v1160
        %1192 = vmatprep.subr.mxu0 0.0
        %1193 = vmatpush1.msra.mxu0 %v1161
        %1194 = vmatprep.subr.mxu0 0.0
        %1195 = vmatpush1.msra.mxu0 %v1162
        %1196 = vmatprep.subr.mxu0 0.0
        %1197 = vmatpush1.msra.mxu0 %v1163
        %1198 = vmatprep.subr.mxu0 0.0
        %1199 = vmatpush1.msra.mxu0 %v1164
        %1200 = vmatprep.subr.mxu0 0.0
        %1201 = vmatpush1.msra.mxu0 %v1165
        %1202 = vmatprep.subr.mxu0 0.0
        %1203 = vmatpush1.msra.mxu0 %v1166
        %1204 = vmatprep.subr.mxu0 0.0
        %1205 = vmatpush1.msra.mxu0 %v1167
        %1206 = vmatprep.subr.mxu0 0.0
        %1207 = vmatpush1.msra.mxu0 %v1168
        %1208 = vmatprep.subr.mxu0 0.0
        %1209 = vmatpush1.msra.mxu0 %v1169
        %1210 = vmatprep.subr.mxu0 0.0
        %1211 = vmatpush1.msra.mxu0 0.0
        %1212 = vmatprep.subr.mxu0 0.0
        %1213 = vmatpush1.msra.mxu0 0.0
        %1214 = vmatprep.subr.mxu0 0.0
        %1215 = vmatpush1.msra.mxu0 0.0
        %1216 = vmatprep.subr.mxu0 0.0
        %1217 = vmatpush1.msra.mxu0 0.0
        %1218 = vmatprep.subr.mxu0 0.0
        %1219 = vmatpush1.msra.mxu0 0.0
        %1220 = vmatprep.subr.mxu0 0.0
        %1221 = vmatpush1.msra.mxu0 0.0
        %1222 = vmatprep.subr.mxu0 0.0
        %1223 = vmatpush1.msra.mxu0 0.0
        %1224 = vmatprep.subr.mxu0 0.0
        %1225 = vmatpush1.msra.mxu0 0.0
        %1226 = vmatprep.subr.mxu0 0.0
        %1227 = vmatpush1.msra.mxu0 0.0
        %1228 = vmatprep.subr.mxu0 0.0
        %1229 = vmatpush1.msra.mxu0 0.0
        %1230 = vmatprep.subr.mxu0 0.0
        %1231 = vmatpush1.msra.mxu0 0.0
        %1232 = vmatprep.subr.mxu0 0.0
        %1233 = vmatpush1.msra.mxu0 0.0
        %1234 = vmatprep.subr.mxu0 0.0
        %1235 = vmatpush1.msra.mxu0 0.0
        %1236 = vmatprep.subr.mxu0 0.0
        %1237 = vmatpush1.msra.mxu0 0.0
        %1238 = vmatprep.subr.mxu0 0.0
        %1239 = vmatpush1.msra.mxu0 0.0
        %1240 = vmatprep.subr.mxu0 0.0
        %1241 = vmatpush1.msra.mxu0 0.0
        %1242 = vmatprep.mubr.f32.mxu0 0.0
        %1243 = vmatmul.mubr.f32.gmra.mrb[0].mxu0 %v1137
        %v1244 = vpop.f32.mrb[0].mxu0
        %v1245 = vadd.f32 %v1176, %v1244
        %v1246 = vpop.f32.mrb[0].mxu0
        %1247 = vmatprep.mubr.f32.mxu0 0.0
        %1248 = vmatmul.mubr.f32.gmra.mrb[0].mxu0 %v1138
        %v1249 = vpop.f32.mrb[0].mxu0
        %v1250 = vadd.f32 %v1176, %v1249
        %v1251 = vpop.f32.mrb[0].mxu0
        %1252 = vmatprep.mubr.f32.mxu0 0.0
        %1253 = vmatmul.mubr.f32.gmra.mrb[0].mxu0 %v1139
        %v1254 = vpop.f32.mrb[0].mxu0
        %v1255 = vadd.f32 %v1176, %v1254
        %v1256 = vpop.f32.mrb[0].mxu0
        %1257 = vmatprep.mubr.f32.mxu0 0.0
        %1258 = vmatmul.mubr.f32.gmra.mrb[0].mxu0 %v1140
        %v1259 = vpop.f32.mrb[0].mxu0
        %v1260 = vadd.f32 %v1176, %v1259
        %v1261 = vpop.f32.mrb[0].mxu0
        %1262 = vmatprep.mubr.f32.mxu0 0.0
        %1263 = vmatmul.mubr.f32.gmra.mrb[0].mxu0 %v1141
        %v1264 = vpop.f32.mrb[0].mxu0
        %v1265 = vadd.f32 %v1176, %v1264
        %v1266 = vpop.f32.mrb[0].mxu0
        %1267 = vmatprep.mubr.f32.mxu0 0.0
        %1268 = vmatmul.mubr.f32.gmra.mrb[0].mxu0 %v1142
        %v1269 = vpop.f32.mrb[0].mxu0
        %v1270 = vadd.f32 %v1176, %v1269
        %v1271 = vpop.f32.mrb[0].mxu0
        %1272 = vmatprep.mubr.f32.mxu0 0.0
        %1273 = vmatmul.mubr.f32.gmra.mrb[0].mxu0 %v1143
        %v1274 = vpop.f32.mrb[0].mxu0
        %v1275 = vadd.f32 %v1176, %v1274
        %v1276 = vpop.f32.mrb[0].mxu0
        %1277 = vmatprep.mubr.f32.mxu0 0.0
        %1278 = vmatmul.mubr.f32.gmra.mrb[0].mxu0 %v1144
        %v1279 = vpop.f32.mrb[0].mxu0
        %v1280 = vadd.f32 %v1176, %v1279
        %v1281 = vpop.f32.mrb[0].mxu0
        %1282 = vmatprep.mubr.f32.mxu0 0.0
        %1283 = vmatmul.mubr.f32.gmra.mrb[0].mxu0 %v1145
        %v1284 = vpop.f32.mrb[0].mxu0
        %v1285 = vadd.f32 %v1176, %v1284
        %v1286 = vpop.f32.mrb[0].mxu0
        %1287 = vmatprep.mubr.f32.mxu0 0.0
        %1288 = vmatmul.mubr.f32.gmra.mrb[0].mxu0 %v1146
        %v1289 = vpop.f32.mrb[0].mxu0
        %v1290 = vadd.f32 %v1176, %v1289
        %v1291 = vpop.f32.mrb[0].mxu0
        %1292 = vmatprep.mubr.f32.mxu0 0.0
        %1293 = vmatmul.mubr.f32.gmra.mrb[0].mxu0 %v1147
        %v1294 = vpop.f32.mrb[0].mxu0
        %v1295 = vadd.f32 %v1176, %v1294
        %v1296 = vpop.f32.mrb[0].mxu0
        %1297 = vmatprep.mubr.f32.mxu0 0.0
        %1298 = vmatmul.mubr.f32.gmra.mrb[0].mxu0 %v1148
        %v1299 = vpop.f32.mrb[0].mxu0
        %v1300 = vadd.f32 %v1176, %v1299
        %v1301 = vpop.f32.mrb[0].mxu0
        %1302 = vmatprep.mubr.f32.mxu0 0.0
        %1303 = vmatmul.mubr.f32.gmra.mrb[0].mxu0 %v1149
        %v1304 = vpop.f32.mrb[0].mxu0
        %v1305 = vadd.f32 %v1176, %v1304
        %v1306 = vpop.f32.mrb[0].mxu0
        %1307 = vmatprep.mubr.f32.mxu0 0.0
        %1308 = vmatmul.mubr.f32.gmra.mrb[0].mxu0 %v1150
        %v1309 = vpop.f32.mrb[0].mxu0
        %v1310 = vadd.f32 %v1176, %v1309
        %v1311 = vpop.f32.mrb[0].mxu0
        %1312 = vmatprep.mubr.f32.mxu0 0.0
        %1313 = vmatmul.mubr.f32.gmra.mrb[0].mxu0 %v1151
        %v1314 = vpop.f32.mrb[0].mxu0
        %v1315 = vadd.f32 %v1176, %v1314
        %v1316 = vpop.f32.mrb[0].mxu0
        %1317 = vmatprep.mubr.f32.mxu0 0.0
        %1318 = vmatmul.mubr.f32.gmra.mrb[0].mxu0 %v1152
        %v1319 = vpop.f32.mrb[0].mxu0
        %v1320 = vadd.f32 %v1176, %v1319
        %v1321 = vpop.f32.mrb[0].mxu0
        %1322 = vdwg.mxu0
        %1323 = vxpose.xlu0.b32.start [1/16] %v1245, 128
        %1324 = vxpose.xlu0.b32.cont [2/16] %v1250, 128
        %1325 = vxpose.xlu0.b32.cont [3/16] %v1255, 128
        %1326 = vxpose.xlu0.b32.cont [4/16] %v1260, 128
        %1327 = vxpose.xlu0.b32.cont [5/16] %v1265, 128
        %1328 = vxpose.xlu0.b32.cont [6/16] %v1270, 128
        %1329 = vxpose.xlu0.b32.cont [7/16] %v1275, 128
        %1330 = vxpose.xlu0.b32.cont [8/16] %v1280, 128
        %1331 = vxpose.xlu0.b32.cont [9/16] %v1285, 128
        %1332 = vxpose.xlu0.b32.cont [10/16] %v1290, 128
        %1333 = vxpose.xlu0.b32.cont [11/16] %v1295, 128
        %1334 = vxpose.xlu0.b32.cont [12/16] %v1300, 128
        %1335 = vxpose.xlu0.b32.cont [13/16] %v1305, 128
        %1336 = vxpose.xlu0.b32.cont [14/16] %v1310, 128
        %1337 = vxpose.xlu0.b32.cont [15/16] %v1315, 128
        %1338 = vxpose.xlu0.b32.end [16/16] %v1320, 128
        %v1339 = vpop.trf.xlu0
        %v1340 = vpop.trf.xlu0
        %v1341 = vpop.trf.xlu0
        %v1342 = vpop.trf.xlu0
        %v1343 = vpop.trf.xlu0
        %v1344 = vpop.trf.xlu0
        %v1345 = vpop.trf.xlu0
        %v1346 = vpop.trf.xlu0
        %v1347 = vpop.trf.xlu0
        %v1348 = vpop.trf.xlu0
        %v1349 = vpop.trf.xlu0
        %v1350 = vpop.trf.xlu0
        %v1351 = vpop.trf.xlu0
        %v1352 = vpop.trf.xlu0
        %v1353 = vpop.trf.xlu0
        %v1354 = vpop.trf.xlu0
        %1355 = vst [vmem:[%s163] sm:$0x1] %v1339
        %s1356 = sand.u32 %s93, 1
        %s1357 = scalar_lea.sflag [#allocation3], %s1356
        %s1358 = sand.u32 %s93, 1
        %s1359 = scalar_lea.vmem [#allocation2], %s1358
        // Predicated region
        $region33: #{mlp_forward.1} parent=31 // pred_check
          %p1360 = pneg %p103
        $region34: #{mlp_forward.1} parent=31 // pred_check_branch
          %1362 = sbr.rel (%p1360) target = $region36
        $region35: #{mlp_forward.1} parent=31 // pred_region
          %s1364 = ssub.s32 16, 16
          %1365 = vsyncadd %s1357, %s1364
          %s1366 = smul.addr %s17, 16
          %s1367 = scalar_lea.hbm %s3, %s1366
          %s1369 = sshll.u32 %s1359, 4
          %s1370 = int_to_ptr.vmem [resolvable:$true] %s1369
          %1372 = dma.vmem_to_hbm [thread:$0]  %s1370, 16, %s1367, %s1357
        $region36: #{mlp_forward.1} parent=31 // pred_fallthru
          _
      $region32: #{mlp_forward.1} parent=5 // pred_fallthru
        _
      %p1373 = scmp.le.s32.totalorder 2, %s12
      // Predicated region
      $region37: #{mlp_forward.1} parent=5 // pred_check
        %p1374 = pneg %p1373
      $region38: #{mlp_forward.1} parent=5 // pred_check_branch
        %1376 = sbr.rel (%p1374) target = $region40
      $region39: #{mlp_forward.1} parent=5 // pred_region
        %s1377 = ssub.s32 %s12, 2
        // Predicated region
        $region41: #{mlp_forward.1} parent=39 // pred_check
          %p1378 = pneg %p109
        $region42: #{mlp_forward.1} parent=39 // pred_check_branch
          %1380 = sbr.rel (%p1378) target = $region44
        $region43: #{mlp_forward.1} parent=39 // pred_region
          %s1381 = sand.u32 %s94, 1
          %s1382 = scalar_lea.sflag [#allocation3], %s1381
          %s1383 = sand.u32 %s94, 1
          %s1384 = scalar_lea.vmem [#allocation2], %s1383
          %1385 = dma.done %s1382, 16
        $region44: #{mlp_forward.1} parent=39 // pred_fallthru
          _
      $region40: #{mlp_forward.1} parent=5 // pred_fallthru
        _
    $region6: #{mlp_forward.1} parent=1 // loop_footer
      %s16 = sadd.s32 1, %s12
    $region7: #{mlp_forward.1} parent=1 // loop_footer_branch
      %11 = sbr.rel target = $region3
    $region8: #{mlp_forward.1} parent=1 // loop_exit
      _
    %1386 = vsyncpa [#allocation3], 1
    %s1387 = scalar_lea.sflag [#allocation3], 1
    %1388 = vsyncpa %s1387, 1

</llo_original>
